<compile_context>
chip_gen: v7x
topology: tpu7x:2x2x1
jax: 0.10.0
libtpu: 0.0.40
codegen_flags: <defaults>
</compile_context>

<pallas_src>
import math

import jax
import jax.numpy as jnp
from jax.experimental import pallas as pl
from jax.experimental.pallas import tpu as pltpu

# ----------------------- synthetic BERT config -----------------------
VOCAB = 30
HIDDEN = 32
N_LAYERS = 2
N_HEADS = 4
HEAD_DIM = HIDDEN // N_HEADS
INTERMEDIATE = 64
MAX_POS = 16
TYPE_VOCAB = 2
INIT_RANGE = 0.02
BATCH = 2            # also the out-features of qa_outputs (matches the module)
SEQ = 8
M_TOKENS = BATCH * SEQ
EPS = 1e-12


def _full_spec(shape):
    """Full-array block (single grid step keeps the whole slab in VMEM)."""
    return pl.BlockSpec(tuple(shape), lambda *_: (0,) * len(shape))


# ----------------------- in-kernel helpers (f32 VPU/EUP math) ----------------
def _layernorm(y, g, b):
    # TF-style layernorm, epsilon inside the sqrt (BERTLayerNorm semantics).
    u = jnp.mean(y, axis=-1, keepdims=True)
    d = y - u
    var = jnp.mean(d * d, axis=-1, keepdims=True)
    return g * (d * jax.lax.rsqrt(var + EPS)) + b


def _erf(x):
    # Abramowitz & Stegun 7.1.26 rational approximation (|err| < 1.5e-7).
    p = 0.3275911
    a1, a2, a3, a4, a5 = (0.254829592, -0.284496736, 1.421413741,
                          -1.453152027, 1.061405429)
    ax = jnp.abs(x)
    t = 1.0 / (1.0 + p * ax)
    poly = ((((a5 * t + a4) * t + a3) * t + a2) * t + a1) * t
    y = 1.0 - poly * jnp.exp(-ax * ax)
    return jnp.where(x >= 0.0, y, -y)


def _gelu(x):
    return x * 0.5 * (1.0 + _erf(x * (1.0 / math.sqrt(2.0))))


# ----------------------- the single fused kernel -----------------------------
def _bert_fused_kernel(word_ref, pos_ref, typ_ref, bias_ref, colmask_ref,
                       eg_ref, eb_ref,
                       wqkv_ref, bqkv_ref, wo_ref, bo_ref, ag_ref, ab_ref,
                       wi_ref, bi_ref, w2_ref, b2_ref, og_ref, ob_ref,
                       qaw_ref, qab_ref,
                       out_ref):
    bf16 = jnp.bfloat16
    f32 = jnp.float32

    # ---- embeddings: word + position (broadcast across batch) + type + LN ---
    pos = jnp.concatenate([pos_ref[...]] * BATCH, axis=0)          # (M, H)
    x = word_ref[...] + typ_ref[...] + pos
    x = _layernorm(x, eg_ref[...], eb_ref[...])

    bias = bias_ref[...]                                           # (NH*M, M)
    scale = 1.0 / math.sqrt(HEAD_DIM)

    for l in range(N_LAYERS):                                      # static unroll
        # ---------------- self-attention block (4 MXU pushes) ----------------
        qkv = jnp.dot(x.astype(bf16), wqkv_ref[l],
                      preferred_element_type=f32) + bqkv_ref[l]    # (M, 3H)
        q = qkv[:, 0:HIDDEN]                                       # f32 (M, H)
        k = qkv[:, HIDDEN:2 * HIDDEN].astype(bf16)                 # (M, H)
        v = qkv[:, 2 * HIDDEN:3 * HIDDEN].astype(bf16)             # (M, H)

        # Head-stacked queries: row block h holds Q masked to head h's columns,
        # so one (NH*M, H)·(M, H)^T dot gives every head's (M, M) scores and
        # the per-row softmax is exactly the per-head softmax.
        qs = jnp.concatenate(
            [q * colmask_ref[h] for h in range(N_HEADS)], axis=0)  # (NH*M, H)
        s = jax.lax.dot_general(qs.astype(bf16), k,
                                (((1,), (1,)), ((), ())),
                                preferred_element_type=f32)        # (NH*M, M)
        s = s * scale + bias
        s = s - jnp.max(s, axis=-1, keepdims=True)
        p = jnp.exp(s)
        p = p * pl.reciprocal(jnp.sum(p, axis=-1, keepdims=True), approx=True)

        # One PV matmul against the full V; pick each head's column group back
        # out with the same per-head column mask (pure VPU, no transposes).
        ctx_full = jnp.dot(p.astype(bf16), v,
                           preferred_element_type=f32)             # (NH*M, H)
        ctx = ctx_full[0:M_TOKENS] * colmask_ref[0]
        for h in range(1, N_HEADS):
            ctx = ctx + ctx_full[h * M_TOKENS:(h + 1) * M_TOKENS] * colmask_ref[h]

        # Single concatenated-head output projection (+ bias folded in).
        attn = jnp.dot(ctx.astype(bf16), wo_ref[l],
                       preferred_element_type=f32) + bo_ref[l]     # (M, H)
        # dropout is identity at inference; residual + BERTLayerNorm in f32.
        x = _layernorm(attn + x, ag_ref[l], ab_ref[l])

        # ---------------- feed-forward block (2 MXU pushes) -------------------
        h1 = jnp.dot(x.astype(bf16), wi_ref[l],
                     preferred_element_type=f32) + bi_ref[l]       # (M, I)
        h1 = _gelu(h1)
        y = jnp.dot(h1.astype(bf16), w2_ref[l],
                    preferred_element_type=f32) + b2_ref[l]        # (M, H)
        x = _layernorm(y + x, og_ref[l], ob_ref[l])

    # ---- qa_outputs: (M, H) x (H, BATCH); only the tiny logits leave VMEM ----
    out_ref[...] = jnp.dot(x.astype(bf16), qaw_ref[...],
                           preferred_element_type=f32) + qab_ref[...]


def bert_fused_forward(params, word, pos, typ, bias_rows, colmask):
    in_arrays = [
        word, pos, typ, bias_rows, colmask,
        params["emb_ln_g"], params["emb_ln_b"],
        params["qkv_w"], params["qkv_b"], params["ao_w"], params["ao_b"],
        params["a_ln_g"], params["a_ln_b"],
        params["i_w"], params["i_b"], params["o_w"], params["o_b"],
        params["o_ln_g"], params["o_ln_b"],
        params["qa_w"], params["qa_b"],
    ]
    return pl.pallas_call(
        _bert_fused_kernel,
        out_shape=jax.ShapeDtypeStruct((M_TOKENS, BATCH), jnp.float32),
        grid=(1,),
        in_specs=[_full_spec(a.shape) for a in in_arrays],
        out_specs=_full_spec((M_TOKENS, BATCH)),
        compiler_params=pltpu.CompilerParams(
            dimension_semantics=("arbitrary",)),
    )(*in_arrays)


# ----------------------- plain-JAX glue --------------------------------------
def build_attn_bias(attention_mask):
    """(B, S) {0,1} mask -> (N_HEADS*B*S, B*S) additive bias.

    -10000 for masked key positions (standard BERT), a large negative for
    cross-batch pairs so one shared score matrix per head is exactly
    equivalent to per-batch attention; tiled along rows once per head to
    match the head-stacked score layout.
    """
    B, S = attention_mask.shape
    key_bias = ((1.0 - attention_mask.astype(jnp.float32)) * -10000.0
                ).reshape(B * S)
    bias = jnp.broadcast_to(key_bias[None, :], (B * S, B * S))
    batch_idx = jnp.repeat(jnp.arange(B), S)
    same_batch = batch_idx[:, None] == batch_idx[None, :]
    bias = jnp.where(same_batch, bias, -1e9)
    return jnp.tile(bias, (N_HEADS, 1))                    # (NH*M, M)


def build_head_colmask():
    """(N_HEADS, 1, HIDDEN) f32 mask: 1 where the column belongs to head h."""
    cols = jnp.arange(HIDDEN) // HEAD_DIM
    m = (cols[None, :] == jnp.arange(N_HEADS)[:, None]).astype(jnp.float32)
    return m[:, None, :]


def init_params(key):
    keys = iter(jax.random.split(key, 64))

    def nrm(shape, dtype=jnp.float32):
        return (INIT_RANGE * jax.random.normal(next(keys), shape)).astype(dtype)

    def zeros(shape):
        return jnp.zeros(shape, jnp.float32)

    qkv_w, ao_w, i_w, o_w = [], [], [], []
    a_ln_g, a_ln_b, o_ln_g, o_ln_b = [], [], [], []
    for _ in range(N_LAYERS):
        qw = nrm((HIDDEN, HIDDEN))
        kw = nrm((HIDDEN, HIDDEN))
        vw = nrm((HIDDEN, HIDDEN))
        qkv_w.append(jnp.concatenate([qw, kw, vw], axis=1))   # (H, 3H)
        ao_w.append(nrm((HIDDEN, HIDDEN)))
        i_w.append(nrm((HIDDEN, INTERMEDIATE)))
        o_w.append(nrm((INTERMEDIATE, HIDDEN)))
        # NB: init_weights in the module sets LayerNorm gamma/beta ~ N(0, 0.02)
        a_ln_g.append(nrm((1, HIDDEN))); a_ln_b.append(nrm((1, HIDDEN)))
        o_ln_g.append(nrm((1, HIDDEN))); o_ln_b.append(nrm((1, HIDDEN)))

    params = {
        "word_emb": nrm((VOCAB, HIDDEN)),
        "pos_emb": nrm((MAX_POS, HIDDEN)),
        "type_emb": nrm((TYPE_VOCAB, HIDDEN)),
        "emb_ln_g": nrm((1, HIDDEN)),
        "emb_ln_b": nrm((1, HIDDEN)),
        # stacked per-layer weights; matmul weights stored bf16 (f32 accum)
        "qkv_w": jnp.stack(qkv_w).astype(jnp.bfloat16),       # (L, H, 3H)
        "qkv_b": zeros((N_LAYERS, 1, 3 * HIDDEN)),
        "ao_w": jnp.stack(ao_w).astype(jnp.bfloat16),          # (L, H, H)
        "ao_b": zeros((N_LAYERS, 1, HIDDEN)),
        "a_ln_g": jnp.stack(a_ln_g), "a_ln_b": jnp.stack(a_ln_b),
        "i_w": jnp.stack(i_w).astype(jnp.bfloat16),            # (L, H, I)
        "i_b": zeros((N_LAYERS, 1, INTERMEDIATE)),
        "o_w": jnp.stack(o_w).astype(jnp.bfloat16),            # (L, I, H)
        "o_b": zeros((N_LAYERS, 1, HIDDEN)),
        "o_ln_g": jnp.stack(o_ln_g), "o_ln_b": jnp.stack(o_ln_b),
        "qa_w": nrm((HIDDEN, BATCH), jnp.bfloat16),            # Linear(H, batch)
        "qa_b": zeros((1, BATCH)),
    }
    # TODO(synk): BertModel's pooler output is computed then discarded by
    # BertForLabelling; it is omitted here since it does not affect the result.
    return params


def bert_for_labelling(params, input_ids, token_type_ids, attention_mask,
                       label_seq=None):
    B, S = input_ids.shape

    # embedding table gathers stay in plain JAX; all math runs in the kernel.
    word = params["word_emb"][input_ids].reshape(B * S, HIDDEN)
    typ = params["type_emb"][token_type_ids].reshape(B * S, HIDDEN)
    pos = params["pos_emb"][:S]                                # (S, H)

    bias_rows = build_attn_bias(attention_mask)                # (NH*M, M)
    colmask = build_head_colmask()                             # (NH, 1, H)

    logits = bert_fused_forward(params, word, pos, typ, bias_rows, colmask)

    # squeeze().view(batch_size, -1): valid here because B == BATCH; it would
    # silently change semantics if they ever diverge.
    logits = logits.reshape(BATCH, -1)                         # (BATCH, S*BATCH)

    if label_seq is not None:
        return jnp.mean((logits - label_seq) ** 2)             # MSELoss
    return logits


if __name__ == "__main__":
    key = jax.random.PRNGKey(0)
    pkey, ikey, tkey = jax.random.split(key, 3)

    params = init_params(pkey)
    input_ids = jax.random.randint(ikey, (BATCH, SEQ), 0, VOCAB, dtype=jnp.int32)
    token_type_ids = jax.random.randint(tkey, (BATCH, SEQ), 0, TYPE_VOCAB,
                                        dtype=jnp.int32)
    attention_mask = jnp.ones((BATCH, SEQ), jnp.int32)

    logits = bert_for_labelling(params, input_ids, token_type_ids, attention_mask)
    jax.block_until_ready(logits)
    assert logits.shape == (BATCH, SEQ * BATCH)
    assert jnp.all(jnp.isfinite(logits))
    print("KERNEL_OK")
</pallas_src>

<mosaic_0001>
module attributes {stable_mosaic.version = 11 : i64} {
  func.func @_bert_fused_kernel(%arg0: i32, %arg1: memref<16x32xf32, #tpu.memory_space<vmem>>, %arg2: memref<8x32xf32, #tpu.memory_space<vmem>>, %arg3: memref<16x32xf32, #tpu.memory_space<vmem>>, %arg4: memref<64x16xf32, #tpu.memory_space<vmem>>, %arg5: memref<4x1x32xf32, #tpu.memory_space<vmem>>, %arg6: memref<1x32xf32, #tpu.memory_space<vmem>>, %arg7: memref<1x32xf32, #tpu.memory_space<vmem>>, %arg8: memref<2x32x96xbf16, #tpu.memory_space<vmem>>, %arg9: memref<2x1x96xf32, #tpu.memory_space<vmem>>, %arg10: memref<2x32x32xbf16, #tpu.memory_space<vmem>>, %arg11: memref<2x1x32xf32, #tpu.memory_space<vmem>>, %arg12: memref<2x1x32xf32, #tpu.memory_space<vmem>>, %arg13: memref<2x1x32xf32, #tpu.memory_space<vmem>>, %arg14: memref<2x32x64xbf16, #tpu.memory_space<vmem>>, %arg15: memref<2x1x64xf32, #tpu.memory_space<vmem>>, %arg16: memref<2x64x32xbf16, #tpu.memory_space<vmem>>, %arg17: memref<2x1x32xf32, #tpu.memory_space<vmem>>, %arg18: memref<2x1x32xf32, #tpu.memory_space<vmem>>, %arg19: memref<2x1x32xf32, #tpu.memory_space<vmem>>, %arg20: memref<32x2xbf16, #tpu.memory_space<vmem>>, %arg21: memref<1x2xf32, #tpu.memory_space<vmem>>, %arg22: memref<16x2xf32, #tpu.memory_space<vmem>>) attributes {dimension_semantics = [#tpu.dimension_semantics<arbitrary>], iteration_bounds = array<i64: 1>, scalar_prefetch = 0 : i64, scratch_operands = 0 : i64, tpu.core_type = #tpu.core_type<tc>, window_params = [{pipeline_mode = #tpu.pipeline_mode<synchronous>, transform_indices = @transform_0, window_bounds = array<i64: 16, 32>}, {pipeline_mode = #tpu.pipeline_mode<synchronous>, transform_indices = @transform_1, window_bounds = array<i64: 8, 32>}, {pipeline_mode = #tpu.pipeline_mode<synchronous>, transform_indices = @transform_2, window_bounds = array<i64: 16, 32>}, {pipeline_mode = #tpu.pipeline_mode<synchronous>, transform_indices = @transform_3, window_bounds = array<i64: 64, 16>}, {pipeline_mode = #tpu.pipeline_mode<synchronous>, transform_indices = @transform_4, window_bounds = array<i64: 4, 1, 32>}, {pipeline_mode = #tpu.pipeline_mode<synchronous>, transform_indices = @transform_5, window_bounds = array<i64: 1, 32>}, {pipeline_mode = #tpu.pipeline_mode<synchronous>, transform_indices = @transform_6, window_bounds = array<i64: 1, 32>}, {pipeline_mode = #tpu.pipeline_mode<synchronous>, transform_indices = @transform_7, window_bounds = array<i64: 2, 32, 96>}, {pipeline_mode = #tpu.pipeline_mode<synchronous>, transform_indices = @transform_8, window_bounds = array<i64: 2, 1, 96>}, {pipeline_mode = #tpu.pipeline_mode<synchronous>, transform_indices = @transform_9, window_bounds = array<i64: 2, 32, 32>}, {pipeline_mode = #tpu.pipeline_mode<synchronous>, transform_indices = @transform_10, window_bounds = array<i64: 2, 1, 32>}, {pipeline_mode = #tpu.pipeline_mode<synchronous>, transform_indices = @transform_11, window_bounds = array<i64: 2, 1, 32>}, {pipeline_mode = #tpu.pipeline_mode<synchronous>, transform_indices = @transform_12, window_bounds = array<i64: 2, 1, 32>}, {pipeline_mode = #tpu.pipeline_mode<synchronous>, transform_indices = @transform_13, window_bounds = array<i64: 2, 32, 64>}, {pipeline_mode = #tpu.pipeline_mode<synchronous>, transform_indices = @transform_14, window_bounds = array<i64: 2, 1, 64>}, {pipeline_mode = #tpu.pipeline_mode<synchronous>, transform_indices = @transform_15, window_bounds = array<i64: 2, 64, 32>}, {pipeline_mode = #tpu.pipeline_mode<synchronous>, transform_indices = @transform_16, window_bounds = array<i64: 2, 1, 32>}, {pipeline_mode = #tpu.pipeline_mode<synchronous>, transform_indices = @transform_17, window_bounds = array<i64: 2, 1, 32>}, {pipeline_mode = #tpu.pipeline_mode<synchronous>, transform_indices = @transform_18, window_bounds = array<i64: 2, 1, 32>}, {pipeline_mode = #tpu.pipeline_mode<synchronous>, transform_indices = @transform_19, window_bounds = array<i64: 32, 2>}, {pipeline_mode = #tpu.pipeline_mode<synchronous>, transform_indices = @transform_20, window_bounds = array<i64: 1, 2>}, {pipeline_mode = #tpu.pipeline_mode<synchronous>, transform_indices = @transform_21, window_bounds = array<i64: 16, 2>}]} {
    %c0 = arith.constant 0 : index
    %c0_0 = arith.constant 0 : index
    %0 = vector.load %arg2[%c0, %c0_0] : memref<8x32xf32, #tpu.memory_space<vmem>>, vector<8x32xf32>
    %1 = tpu.concatenate %0, %0 in 0 : vector<8x32xf32>, vector<8x32xf32> -> vector<16x32xf32>
    %c0_1 = arith.constant 0 : index
    %c0_2 = arith.constant 0 : index
    %2 = vector.load %arg1[%c0_1, %c0_2] : memref<16x32xf32, #tpu.memory_space<vmem>>, vector<16x32xf32>
    %c0_3 = arith.constant 0 : index
    %c0_4 = arith.constant 0 : index
    %3 = vector.load %arg3[%c0_3, %c0_4] : memref<16x32xf32, #tpu.memory_space<vmem>>, vector<16x32xf32>
    %4 = arith.addf %2, %3 : vector<16x32xf32>
    %5 = arith.addf %4, %1 : vector<16x32xf32>
    %c0_5 = arith.constant 0 : index
    %c0_6 = arith.constant 0 : index
    %6 = vector.load %arg6[%c0_5, %c0_6] : memref<1x32xf32, #tpu.memory_space<vmem>>, vector<1x32xf32>
    %c0_7 = arith.constant 0 : index
    %c0_8 = arith.constant 0 : index
    %7 = vector.load %arg7[%c0_7, %c0_8] : memref<1x32xf32, #tpu.memory_space<vmem>>, vector<1x32xf32>
    %cst = arith.constant dense<0.000000e+00> : vector<16xf32>
    %8 = vector.multi_reduction <add>, %5, %cst [1] : vector<16x32xf32> to vector<16xf32>
    %9 = vector.shape_cast %8 : vector<16xf32> to vector<16x1xf32>
    %cst_9 = arith.constant 3.200000e+01 : f32
    %10 = vector.broadcast %cst_9 : f32 to vector<16x1xf32>
    %11 = arith.divf %9, %10 : vector<16x1xf32>
    %12 = vector.broadcast %11 : vector<16x1xf32> to vector<16x32xf32>
    %13 = arith.subf %5, %12 : vector<16x32xf32>
    %14 = arith.mulf %13, %13 : vector<16x32xf32>
    %cst_10 = arith.constant dense<0.000000e+00> : vector<16xf32>
    %15 = vector.multi_reduction <add>, %14, %cst_10 [1] : vector<16x32xf32> to vector<16xf32>
    %16 = vector.shape_cast %15 : vector<16xf32> to vector<16x1xf32>
    %cst_11 = arith.constant 3.200000e+01 : f32
    %17 = vector.broadcast %cst_11 : f32 to vector<16x1xf32>
    %18 = arith.divf %16, %17 : vector<16x1xf32>
    %cst_12 = arith.constant 9.99999996E-13 : f32
    %19 = vector.broadcast %cst_12 : f32 to vector<16x1xf32>
    %20 = arith.addf %18, %19 : vector<16x1xf32>
    %21 = math.rsqrt %20 : vector<16x1xf32>
    %22 = vector.broadcast %21 : vector<16x1xf32> to vector<16x32xf32>
    %23 = arith.mulf %13, %22 : vector<16x32xf32>
    %24 = vector.broadcast %6 : vector<1x32xf32> to vector<16x32xf32>
    %25 = arith.mulf %24, %23 : vector<16x32xf32>
    %26 = vector.broadcast %7 : vector<1x32xf32> to vector<16x32xf32>
    %27 = arith.addf %25, %26 : vector<16x32xf32>
    %c0_13 = arith.constant 0 : index
    %c0_14 = arith.constant 0 : index
    %28 = vector.load %arg4[%c0_13, %c0_14] : memref<64x16xf32, #tpu.memory_space<vmem>>, vector<64x16xf32>
    %29 = arith.truncf %27 : vector<16x32xf32> to vector<16x32xbf16>
    %c0_15 = arith.constant 0 : index
    %c0_16 = arith.constant 0 : index
    %c0_17 = arith.constant 0 : index
    %30 = vector.load %arg8[%c0_15, %c0_16, %c0_17] : memref<2x32x96xbf16, #tpu.memory_space<vmem>>, vector<1x32x96xbf16>
    %31 = vector.shape_cast %30 : vector<1x32x96xbf16> to vector<32x96xbf16>
    %cst_18 = arith.constant dense<0.000000e+00> : vector<16x96xf32>
    %32 = tpu.matmul %29, %31, %cst_18 {dimension_numbers = #tpu.dot_dimension_numbers<[1], [0], [0], [1], [0, 0, 1, 1], [], []>} : vector<16x32xbf16>, vector<32x96xbf16>, vector<16x96xf32> -> vector<16x96xf32>
    %c0_19 = arith.constant 0 : index
    %c0_20 = arith.constant 0 : index
    %c0_21 = arith.constant 0 : index
    %33 = vector.load %arg9[%c0_19, %c0_20, %c0_21] : memref<2x1x96xf32, #tpu.memory_space<vmem>>, vector<1x1x96xf32>
    %34 = vector.shape_cast %33 : vector<1x1x96xf32> to vector<1x96xf32>
    %35 = vector.broadcast %34 : vector<1x96xf32> to vector<16x96xf32>
    %36 = arith.addf %32, %35 : vector<16x96xf32>
    %37 = vector.extract_strided_slice %36 {offsets = [0, 0], sizes = [16, 32], strides = [1, 1]} : vector<16x96xf32> to vector<16x32xf32>
    %38 = vector.extract_strided_slice %36 {offsets = [0, 32], sizes = [16, 32], strides = [1, 1]} : vector<16x96xf32> to vector<16x32xf32>
    %39 = arith.truncf %38 : vector<16x32xf32> to vector<16x32xbf16>
    %40 = vector.extract_strided_slice %36 {offsets = [0, 64], sizes = [16, 32], strides = [1, 1]} : vector<16x96xf32> to vector<16x32xf32>
    %41 = arith.truncf %40 : vector<16x32xf32> to vector<16x32xbf16>
    %c0_22 = arith.constant 0 : index
    %c0_23 = arith.constant 0 : index
    %c0_24 = arith.constant 0 : index
    %42 = vector.load %arg5[%c0_22, %c0_23, %c0_24] : memref<4x1x32xf32, #tpu.memory_space<vmem>>, vector<1x1x32xf32>
    %43 = vector.shape_cast %42 : vector<1x1x32xf32> to vector<1x32xf32>
    %44 = vector.broadcast %43 : vector<1x32xf32> to vector<16x32xf32>
    %45 = arith.mulf %37, %44 : vector<16x32xf32>
    %c1 = arith.constant 1 : index
    %c0_25 = arith.constant 0 : index
    %c0_26 = arith.constant 0 : index
    %46 = vector.load %arg5[%c1, %c0_25, %c0_26] : memref<4x1x32xf32, #tpu.memory_space<vmem>>, vector<1x1x32xf32>
    %47 = vector.shape_cast %46 : vector<1x1x32xf32> to vector<1x32xf32>
    %48 = vector.broadcast %47 : vector<1x32xf32> to vector<16x32xf32>
    %49 = arith.mulf %37, %48 : vector<16x32xf32>
    %c2 = arith.constant 2 : index
    %c0_27 = arith.constant 0 : index
    %c0_28 = arith.constant 0 : index
    %50 = vector.load %arg5[%c2, %c0_27, %c0_28] : memref<4x1x32xf32, #tpu.memory_space<vmem>>, vector<1x1x32xf32>
    %51 = vector.shape_cast %50 : vector<1x1x32xf32> to vector<1x32xf32>
    %52 = vector.broadcast %51 : vector<1x32xf32> to vector<16x32xf32>
    %53 = arith.mulf %37, %52 : vector<16x32xf32>
    %c3 = arith.constant 3 : index
    %c0_29 = arith.constant 0 : index
    %c0_30 = arith.constant 0 : index
    %54 = vector.load %arg5[%c3, %c0_29, %c0_30] : memref<4x1x32xf32, #tpu.memory_space<vmem>>, vector<1x1x32xf32>
    %55 = vector.shape_cast %54 : vector<1x1x32xf32> to vector<1x32xf32>
    %56 = vector.broadcast %55 : vector<1x32xf32> to vector<16x32xf32>
    %57 = arith.mulf %37, %56 : vector<16x32xf32>
    %58 = tpu.concatenate %45, %49, %53, %57 in 0 : vector<16x32xf32>, vector<16x32xf32>, vector<16x32xf32>, vector<16x32xf32> -> vector<64x32xf32>
    %59 = arith.truncf %58 : vector<64x32xf32> to vector<64x32xbf16>
    %cst_31 = arith.constant dense<0.000000e+00> : vector<64x16xf32>
    %60 = tpu.matmul %59, %39, %cst_31 {dimension_numbers = #tpu.dot_dimension_numbers<[1], [1], [0], [0], [0, 0, 1, 0], [], []>} : vector<64x32xbf16>, vector<16x32xbf16>, vector<64x16xf32> -> vector<64x16xf32>
    %cst_32 = arith.constant 0.353553385 : f32
    %61 = vector.broadcast %cst_32 : f32 to vector<64x16xf32>
    %62 = arith.mulf %60, %61 : vector<64x16xf32>
    %63 = arith.addf %62, %28 : vector<64x16xf32>
    %cst_33 = arith.constant dense<0xFF800000> : vector<64xf32>
    %64 = vector.multi_reduction <maximumf>, %63, %cst_33 [1] : vector<64x16xf32> to vector<64xf32>
    %65 = vector.shape_cast %64 : vector<64xf32> to vector<64x1xf32>
    %66 = vector.broadcast %65 : vector<64x1xf32> to vector<64x16xf32>
    %67 = arith.subf %63, %66 : vector<64x16xf32>
    %68 = math.exp %67 : vector<64x16xf32>
    %cst_34 = arith.constant dense<0.000000e+00> : vector<64xf32>
    %69 = vector.multi_reduction <add>, %68, %cst_34 [1] : vector<64x16xf32> to vector<64xf32>
    %70 = vector.shape_cast %69 : vector<64xf32> to vector<64x1xf32>
    %71 = tpu.reciprocal %70 {approx = true} : vector<64x1xf32> -> vector<64x1xf32>
    %72 = vector.broadcast %71 : vector<64x1xf32> to vector<64x16xf32>
    %73 = arith.mulf %68, %72 : vector<64x16xf32>
    %74 = arith.truncf %73 : vector<64x16xf32> to vector<64x16xbf16>
    %cst_35 = arith.constant dense<0.000000e+00> : vector<64x32xf32>
    %75 = tpu.matmul %74, %41, %cst_35 {dimension_numbers = #tpu.dot_dimension_numbers<[1], [0], [0], [1], [0, 0, 1, 1], [], []>} : vector<64x16xbf16>, vector<16x32xbf16>, vector<64x32xf32> -> vector<64x32xf32>
    %76 = vector.extract_strided_slice %75 {offsets = [0, 0], sizes = [16, 32], strides = [1, 1]} : vector<64x32xf32> to vector<16x32xf32>
    %c0_36 = arith.constant 0 : index
    %c0_37 = arith.constant 0 : index
    %c0_38 = arith.constant 0 : index
    %77 = vector.load %arg5[%c0_36, %c0_37, %c0_38] : memref<4x1x32xf32, #tpu.memory_space<vmem>>, vector<1x1x32xf32>
    %78 = vector.shape_cast %77 : vector<1x1x32xf32> to vector<1x32xf32>
    %79 = vector.broadcast %78 : vector<1x32xf32> to vector<16x32xf32>
    %80 = arith.mulf %76, %79 : vector<16x32xf32>
    %81 = vector.extract_strided_slice %75 {offsets = [16, 0], sizes = [16, 32], strides = [1, 1]} : vector<64x32xf32> to vector<16x32xf32>
    %c1_39 = arith.constant 1 : index
    %c0_40 = arith.constant 0 : index
    %c0_41 = arith.constant 0 : index
    %82 = vector.load %arg5[%c1_39, %c0_40, %c0_41] : memref<4x1x32xf32, #tpu.memory_space<vmem>>, vector<1x1x32xf32>
    %83 = vector.shape_cast %82 : vector<1x1x32xf32> to vector<1x32xf32>
    %84 = vector.broadcast %83 : vector<1x32xf32> to vector<16x32xf32>
    %85 = arith.mulf %81, %84 : vector<16x32xf32>
    %86 = arith.addf %80, %85 : vector<16x32xf32>
    %87 = vector.extract_strided_slice %75 {offsets = [32, 0], sizes = [16, 32], strides = [1, 1]} : vector<64x32xf32> to vector<16x32xf32>
    %c2_42 = arith.constant 2 : index
    %c0_43 = arith.constant 0 : index
    %c0_44 = arith.constant 0 : index
    %88 = vector.load %arg5[%c2_42, %c0_43, %c0_44] : memref<4x1x32xf32, #tpu.memory_space<vmem>>, vector<1x1x32xf32>
    %89 = vector.shape_cast %88 : vector<1x1x32xf32> to vector<1x32xf32>
    %90 = vector.broadcast %89 : vector<1x32xf32> to vector<16x32xf32>
    %91 = arith.mulf %87, %90 : vector<16x32xf32>
    %92 = arith.addf %86, %91 : vector<16x32xf32>
    %93 = vector.extract_strided_slice %75 {offsets = [48, 0], sizes = [16, 32], strides = [1, 1]} : vector<64x32xf32> to vector<16x32xf32>
    %c3_45 = arith.constant 3 : index
    %c0_46 = arith.constant 0 : index
    %c0_47 = arith.constant 0 : index
    %94 = vector.load %arg5[%c3_45, %c0_46, %c0_47] : memref<4x1x32xf32, #tpu.memory_space<vmem>>, vector<1x1x32xf32>
    %95 = vector.shape_cast %94 : vector<1x1x32xf32> to vector<1x32xf32>
    %96 = vector.broadcast %95 : vector<1x32xf32> to vector<16x32xf32>
    %97 = arith.mulf %93, %96 : vector<16x32xf32>
    %98 = arith.addf %92, %97 : vector<16x32xf32>
    %99 = arith.truncf %98 : vector<16x32xf32> to vector<16x32xbf16>
    %c0_48 = arith.constant 0 : index
    %c0_49 = arith.constant 0 : index
    %c0_50 = arith.constant 0 : index
    %100 = vector.load %arg10[%c0_48, %c0_49, %c0_50] : memref<2x32x32xbf16, #tpu.memory_space<vmem>>, vector<1x32x32xbf16>
    %101 = vector.shape_cast %100 : vector<1x32x32xbf16> to vector<32x32xbf16>
    %cst_51 = arith.constant dense<0.000000e+00> : vector<16x32xf32>
    %102 = tpu.matmul %99, %101, %cst_51 {dimension_numbers = #tpu.dot_dimension_numbers<[1], [0], [0], [1], [0, 0, 1, 1], [], []>} : vector<16x32xbf16>, vector<32x32xbf16>, vector<16x32xf32> -> vector<16x32xf32>
    %c0_52 = arith.constant 0 : index
    %c0_53 = arith.constant 0 : index
    %c0_54 = arith.constant 0 : index
    %103 = vector.load %arg11[%c0_52, %c0_53, %c0_54] : memref<2x1x32xf32, #tpu.memory_space<vmem>>, vector<1x1x32xf32>
    %104 = vector.shape_cast %103 : vector<1x1x32xf32> to vector<1x32xf32>
    %105 = vector.broadcast %104 : vector<1x32xf32> to vector<16x32xf32>
    %106 = arith.addf %102, %105 : vector<16x32xf32>
    %107 = arith.addf %106, %27 : vector<16x32xf32>
    %c0_55 = arith.constant 0 : index
    %c0_56 = arith.constant 0 : index
    %c0_57 = arith.constant 0 : index
    %108 = vector.load %arg12[%c0_55, %c0_56, %c0_57] : memref<2x1x32xf32, #tpu.memory_space<vmem>>, vector<1x1x32xf32>
    %109 = vector.shape_cast %108 : vector<1x1x32xf32> to vector<1x32xf32>
    %c0_58 = arith.constant 0 : index
    %c0_59 = arith.constant 0 : index
    %c0_60 = arith.constant 0 : index
    %110 = vector.load %arg13[%c0_58, %c0_59, %c0_60] : memref<2x1x32xf32, #tpu.memory_space<vmem>>, vector<1x1x32xf32>
    %111 = vector.shape_cast %110 : vector<1x1x32xf32> to vector<1x32xf32>
    %cst_61 = arith.constant dense<0.000000e+00> : vector<16xf32>
    %112 = vector.multi_reduction <add>, %107, %cst_61 [1] : vector<16x32xf32> to vector<16xf32>
    %113 = vector.shape_cast %112 : vector<16xf32> to vector<16x1xf32>
    %cst_62 = arith.constant 3.200000e+01 : f32
    %114 = vector.broadcast %cst_62 : f32 to vector<16x1xf32>
    %115 = arith.divf %113, %114 : vector<16x1xf32>
    %116 = vector.broadcast %115 : vector<16x1xf32> to vector<16x32xf32>
    %117 = arith.subf %107, %116 : vector<16x32xf32>
    %118 = arith.mulf %117, %117 : vector<16x32xf32>
    %cst_63 = arith.constant dense<0.000000e+00> : vector<16xf32>
    %119 = vector.multi_reduction <add>, %118, %cst_63 [1] : vector<16x32xf32> to vector<16xf32>
    %120 = vector.shape_cast %119 : vector<16xf32> to vector<16x1xf32>
    %cst_64 = arith.constant 3.200000e+01 : f32
    %121 = vector.broadcast %cst_64 : f32 to vector<16x1xf32>
    %122 = arith.divf %120, %121 : vector<16x1xf32>
    %cst_65 = arith.constant 9.99999996E-13 : f32
    %123 = vector.broadcast %cst_65 : f32 to vector<16x1xf32>
    %124 = arith.addf %122, %123 : vector<16x1xf32>
    %125 = math.rsqrt %124 : vector<16x1xf32>
    %126 = vector.broadcast %125 : vector<16x1xf32> to vector<16x32xf32>
    %127 = arith.mulf %117, %126 : vector<16x32xf32>
    %128 = vector.broadcast %109 : vector<1x32xf32> to vector<16x32xf32>
    %129 = arith.mulf %128, %127 : vector<16x32xf32>
    %130 = vector.broadcast %111 : vector<1x32xf32> to vector<16x32xf32>
    %131 = arith.addf %129, %130 : vector<16x32xf32>
    %132 = arith.truncf %131 : vector<16x32xf32> to vector<16x32xbf16>
    %c0_66 = arith.constant 0 : index
    %c0_67 = arith.constant 0 : index
    %c0_68 = arith.constant 0 : index
    %133 = vector.load %arg14[%c0_66, %c0_67, %c0_68] : memref<2x32x64xbf16, #tpu.memory_space<vmem>>, vector<1x32x64xbf16>
    %134 = vector.shape_cast %133 : vector<1x32x64xbf16> to vector<32x64xbf16>
    %cst_69 = arith.constant dense<0.000000e+00> : vector<16x64xf32>
    %135 = tpu.matmul %132, %134, %cst_69 {dimension_numbers = #tpu.dot_dimension_numbers<[1], [0], [0], [1], [0, 0, 1, 1], [], []>} : vector<16x32xbf16>, vector<32x64xbf16>, vector<16x64xf32> -> vector<16x64xf32>
    %c0_70 = arith.constant 0 : index
    %c0_71 = arith.constant 0 : index
    %c0_72 = arith.constant 0 : index
    %136 = vector.load %arg15[%c0_70, %c0_71, %c0_72] : memref<2x1x64xf32, #tpu.memory_space<vmem>>, vector<1x1x64xf32>
    %137 = vector.shape_cast %136 : vector<1x1x64xf32> to vector<1x64xf32>
    %138 = vector.broadcast %137 : vector<1x64xf32> to vector<16x64xf32>
    %139 = arith.addf %135, %138 : vector<16x64xf32>
    %cst_73 = arith.constant 5.000000e-01 : f32
    %140 = vector.broadcast %cst_73 : f32 to vector<16x64xf32>
    %141 = arith.mulf %139, %140 : vector<16x64xf32>
    %cst_74 = arith.constant 0.707106769 : f32
    %142 = vector.broadcast %cst_74 : f32 to vector<16x64xf32>
    %143 = arith.mulf %139, %142 : vector<16x64xf32>
    %144 = math.absf %143 : vector<16x64xf32>
    %cst_75 = arith.constant 0.327591091 : f32
    %145 = vector.broadcast %cst_75 : f32 to vector<16x64xf32>
    %146 = arith.mulf %145, %144 : vector<16x64xf32>
    %cst_76 = arith.constant 1.000000e+00 : f32
    %147 = vector.broadcast %cst_76 : f32 to vector<16x64xf32>
    %148 = arith.addf %147, %146 : vector<16x64xf32>
    %cst_77 = arith.constant 1.000000e+00 : f32
    %149 = vector.broadcast %cst_77 : f32 to vector<16x64xf32>
    %150 = arith.divf %149, %148 : vector<16x64xf32>
    %cst_78 = arith.constant 1.06140542 : f32
    %151 = vector.broadcast %cst_78 : f32 to vector<16x64xf32>
    %152 = arith.mulf %151, %150 : vector<16x64xf32>
    %cst_79 = arith.constant -1.45315206 : f32
    %153 = vector.broadcast %cst_79 : f32 to vector<16x64xf32>
    %154 = arith.addf %152, %153 : vector<16x64xf32>
    %155 = arith.mulf %154, %150 : vector<16x64xf32>
    %cst_80 = arith.constant 1.42141378 : f32
    %156 = vector.broadcast %cst_80 : f32 to vector<16x64xf32>
    %157 = arith.addf %155, %156 : vector<16x64xf32>
    %158 = arith.mulf %157, %150 : vector<16x64xf32>
    %cst_81 = arith.constant -0.284496725 : f32
    %159 = vector.broadcast %cst_81 : f32 to vector<16x64xf32>
    %160 = arith.addf %158, %159 : vector<16x64xf32>
    %161 = arith.mulf %160, %150 : vector<16x64xf32>
    %cst_82 = arith.constant 0.254829586 : f32
    %162 = vector.broadcast %cst_82 : f32 to vector<16x64xf32>
    %163 = arith.addf %161, %162 : vector<16x64xf32>
    %164 = arith.mulf %163, %150 : vector<16x64xf32>
    %cst_83 = arith.constant 0.000000e+00 : f32
    %165 = vector.broadcast %cst_83 : f32 to vector<16x64xf32>
    %166 = arith.subf %165, %144 : vector<16x64xf32>
    %167 = arith.mulf %166, %144 : vector<16x64xf32>
    %168 = math.exp %167 : vector<16x64xf32>
    %169 = arith.mulf %164, %168 : vector<16x64xf32>
    %cst_84 = arith.constant 1.000000e+00 : f32
    %170 = vector.broadcast %cst_84 : f32 to vector<16x64xf32>
    %171 = arith.subf %170, %169 : vector<16x64xf32>
    %cst_85 = arith.constant 0.000000e+00 : f32
    %172 = vector.broadcast %cst_85 : f32 to vector<16x64xf32>
    %173 = arith.cmpf oge, %143, %172 : vector<16x64xf32>
    %cst_86 = arith.constant 0.000000e+00 : f32
    %174 = vector.broadcast %cst_86 : f32 to vector<16x64xf32>
    %175 = arith.subf %174, %171 : vector<16x64xf32>
    %176 = arith.select %173, %171, %175 : vector<16x64xi1>, vector<16x64xf32>
    %cst_87 = arith.constant 1.000000e+00 : f32
    %177 = vector.broadcast %cst_87 : f32 to vector<16x64xf32>
    %178 = arith.addf %177, %176 : vector<16x64xf32>
    %179 = arith.mulf %141, %178 : vector<16x64xf32>
    %180 = arith.truncf %179 : vector<16x64xf32> to vector<16x64xbf16>
    %c0_88 = arith.constant 0 : index
    %c0_89 = arith.constant 0 : index
    %c0_90 = arith.constant 0 : index
    %181 = vector.load %arg16[%c0_88, %c0_89, %c0_90] : memref<2x64x32xbf16, #tpu.memory_space<vmem>>, vector<1x64x32xbf16>
    %182 = vector.shape_cast %181 : vector<1x64x32xbf16> to vector<64x32xbf16>
    %cst_91 = arith.constant dense<0.000000e+00> : vector<16x32xf32>
    %183 = tpu.matmul %180, %182, %cst_91 {dimension_numbers = #tpu.dot_dimension_numbers<[1], [0], [0], [1], [0, 0, 1, 1], [], []>} : vector<16x64xbf16>, vector<64x32xbf16>, vector<16x32xf32> -> vector<16x32xf32>
    %c0_92 = arith.constant 0 : index
    %c0_93 = arith.constant 0 : index
    %c0_94 = arith.constant 0 : index
    %184 = vector.load %arg17[%c0_92, %c0_93, %c0_94] : memref<2x1x32xf32, #tpu.memory_space<vmem>>, vector<1x1x32xf32>
    %185 = vector.shape_cast %184 : vector<1x1x32xf32> to vector<1x32xf32>
    %186 = vector.broadcast %185 : vector<1x32xf32> to vector<16x32xf32>
    %187 = arith.addf %183, %186 : vector<16x32xf32>
    %188 = arith.addf %187, %131 : vector<16x32xf32>
    %c0_95 = arith.constant 0 : index
    %c0_96 = arith.constant 0 : index
    %c0_97 = arith.constant 0 : index
    %189 = vector.load %arg18[%c0_95, %c0_96, %c0_97] : memref<2x1x32xf32, #tpu.memory_space<vmem>>, vector<1x1x32xf32>
    %190 = vector.shape_cast %189 : vector<1x1x32xf32> to vector<1x32xf32>
    %c0_98 = arith.constant 0 : index
    %c0_99 = arith.constant 0 : index
    %c0_100 = arith.constant 0 : index
    %191 = vector.load %arg19[%c0_98, %c0_99, %c0_100] : memref<2x1x32xf32, #tpu.memory_space<vmem>>, vector<1x1x32xf32>
    %192 = vector.shape_cast %191 : vector<1x1x32xf32> to vector<1x32xf32>
    %cst_101 = arith.constant dense<0.000000e+00> : vector<16xf32>
    %193 = vector.multi_reduction <add>, %188, %cst_101 [1] : vector<16x32xf32> to vector<16xf32>
    %194 = vector.shape_cast %193 : vector<16xf32> to vector<16x1xf32>
    %cst_102 = arith.constant 3.200000e+01 : f32
    %195 = vector.broadcast %cst_102 : f32 to vector<16x1xf32>
    %196 = arith.divf %194, %195 : vector<16x1xf32>
    %197 = vector.broadcast %196 : vector<16x1xf32> to vector<16x32xf32>
    %198 = arith.subf %188, %197 : vector<16x32xf32>
    %199 = arith.mulf %198, %198 : vector<16x32xf32>
    %cst_103 = arith.constant dense<0.000000e+00> : vector<16xf32>
    %200 = vector.multi_reduction <add>, %199, %cst_103 [1] : vector<16x32xf32> to vector<16xf32>
    %201 = vector.shape_cast %200 : vector<16xf32> to vector<16x1xf32>
    %cst_104 = arith.constant 3.200000e+01 : f32
    %202 = vector.broadcast %cst_104 : f32 to vector<16x1xf32>
    %203 = arith.divf %201, %202 : vector<16x1xf32>
    %cst_105 = arith.constant 9.99999996E-13 : f32
    %204 = vector.broadcast %cst_105 : f32 to vector<16x1xf32>
    %205 = arith.addf %203, %204 : vector<16x1xf32>
    %206 = math.rsqrt %205 : vector<16x1xf32>
    %207 = vector.broadcast %206 : vector<16x1xf32> to vector<16x32xf32>
    %208 = arith.mulf %198, %207 : vector<16x32xf32>
    %209 = vector.broadcast %190 : vector<1x32xf32> to vector<16x32xf32>
    %210 = arith.mulf %209, %208 : vector<16x32xf32>
    %211 = vector.broadcast %192 : vector<1x32xf32> to vector<16x32xf32>
    %212 = arith.addf %210, %211 : vector<16x32xf32>
    %213 = arith.truncf %212 : vector<16x32xf32> to vector<16x32xbf16>
    %c1_106 = arith.constant 1 : index
    %c0_107 = arith.constant 0 : index
    %c0_108 = arith.constant 0 : index
    %214 = vector.load %arg8[%c1_106, %c0_107, %c0_108] : memref<2x32x96xbf16, #tpu.memory_space<vmem>>, vector<1x32x96xbf16>
    %215 = vector.shape_cast %214 : vector<1x32x96xbf16> to vector<32x96xbf16>
    %cst_109 = arith.constant dense<0.000000e+00> : vector<16x96xf32>
    %216 = tpu.matmul %213, %215, %cst_109 {dimension_numbers = #tpu.dot_dimension_numbers<[1], [0], [0], [1], [0, 0, 1, 1], [], []>} : vector<16x32xbf16>, vector<32x96xbf16>, vector<16x96xf32> -> vector<16x96xf32>
    %c1_110 = arith.constant 1 : index
    %c0_111 = arith.constant 0 : index
    %c0_112 = arith.constant 0 : index
    %217 = vector.load %arg9[%c1_110, %c0_111, %c0_112] : memref<2x1x96xf32, #tpu.memory_space<vmem>>, vector<1x1x96xf32>
    %218 = vector.shape_cast %217 : vector<1x1x96xf32> to vector<1x96xf32>
    %219 = vector.broadcast %218 : vector<1x96xf32> to vector<16x96xf32>
    %220 = arith.addf %216, %219 : vector<16x96xf32>
    %221 = vector.extract_strided_slice %220 {offsets = [0, 0], sizes = [16, 32], strides = [1, 1]} : vector<16x96xf32> to vector<16x32xf32>
    %222 = vector.extract_strided_slice %220 {offsets = [0, 32], sizes = [16, 32], strides = [1, 1]} : vector<16x96xf32> to vector<16x32xf32>
    %223 = arith.truncf %222 : vector<16x32xf32> to vector<16x32xbf16>
    %224 = vector.extract_strided_slice %220 {offsets = [0, 64], sizes = [16, 32], strides = [1, 1]} : vector<16x96xf32> to vector<16x32xf32>
    %225 = arith.truncf %224 : vector<16x32xf32> to vector<16x32xbf16>
    %c0_113 = arith.constant 0 : index
    %c0_114 = arith.constant 0 : index
    %c0_115 = arith.constant 0 : index
    %226 = vector.load %arg5[%c0_113, %c0_114, %c0_115] : memref<4x1x32xf32, #tpu.memory_space<vmem>>, vector<1x1x32xf32>
    %227 = vector.shape_cast %226 : vector<1x1x32xf32> to vector<1x32xf32>
    %228 = vector.broadcast %227 : vector<1x32xf32> to vector<16x32xf32>
    %229 = arith.mulf %221, %228 : vector<16x32xf32>
    %c1_116 = arith.constant 1 : index
    %c0_117 = arith.constant 0 : index
    %c0_118 = arith.constant 0 : index
    %230 = vector.load %arg5[%c1_116, %c0_117, %c0_118] : memref<4x1x32xf32, #tpu.memory_space<vmem>>, vector<1x1x32xf32>
    %231 = vector.shape_cast %230 : vector<1x1x32xf32> to vector<1x32xf32>
    %232 = vector.broadcast %231 : vector<1x32xf32> to vector<16x32xf32>
    %233 = arith.mulf %221, %232 : vector<16x32xf32>
    %c2_119 = arith.constant 2 : index
    %c0_120 = arith.constant 0 : index
    %c0_121 = arith.constant 0 : index
    %234 = vector.load %arg5[%c2_119, %c0_120, %c0_121] : memref<4x1x32xf32, #tpu.memory_space<vmem>>, vector<1x1x32xf32>
    %235 = vector.shape_cast %234 : vector<1x1x32xf32> to vector<1x32xf32>
    %236 = vector.broadcast %235 : vector<1x32xf32> to vector<16x32xf32>
    %237 = arith.mulf %221, %236 : vector<16x32xf32>
    %c3_122 = arith.constant 3 : index
    %c0_123 = arith.constant 0 : index
    %c0_124 = arith.constant 0 : index
    %238 = vector.load %arg5[%c3_122, %c0_123, %c0_124] : memref<4x1x32xf32, #tpu.memory_space<vmem>>, vector<1x1x32xf32>
    %239 = vector.shape_cast %238 : vector<1x1x32xf32> to vector<1x32xf32>
    %240 = vector.broadcast %239 : vector<1x32xf32> to vector<16x32xf32>
    %241 = arith.mulf %221, %240 : vector<16x32xf32>
    %242 = tpu.concatenate %229, %233, %237, %241 in 0 : vector<16x32xf32>, vector<16x32xf32>, vector<16x32xf32>, vector<16x32xf32> -> vector<64x32xf32>
    %243 = arith.truncf %242 : vector<64x32xf32> to vector<64x32xbf16>
    %cst_125 = arith.constant dense<0.000000e+00> : vector<64x16xf32>
    %244 = tpu.matmul %243, %223, %cst_125 {dimension_numbers = #tpu.dot_dimension_numbers<[1], [1], [0], [0], [0, 0, 1, 0], [], []>} : vector<64x32xbf16>, vector<16x32xbf16>, vector<64x16xf32> -> vector<64x16xf32>
    %cst_126 = arith.constant 0.353553385 : f32
    %245 = vector.broadcast %cst_126 : f32 to vector<64x16xf32>
    %246 = arith.mulf %244, %245 : vector<64x16xf32>
    %247 = arith.addf %246, %28 : vector<64x16xf32>
    %cst_127 = arith.constant dense<0xFF800000> : vector<64xf32>
    %248 = vector.multi_reduction <maximumf>, %247, %cst_127 [1] : vector<64x16xf32> to vector<64xf32>
    %249 = vector.shape_cast %248 : vector<64xf32> to vector<64x1xf32>
    %250 = vector.broadcast %249 : vector<64x1xf32> to vector<64x16xf32>
    %251 = arith.subf %247, %250 : vector<64x16xf32>
    %252 = math.exp %251 : vector<64x16xf32>
    %cst_128 = arith.constant dense<0.000000e+00> : vector<64xf32>
    %253 = vector.multi_reduction <add>, %252, %cst_128 [1] : vector<64x16xf32> to vector<64xf32>
    %254 = vector.shape_cast %253 : vector<64xf32> to vector<64x1xf32>
    %255 = tpu.reciprocal %254 {approx = true} : vector<64x1xf32> -> vector<64x1xf32>
    %256 = vector.broadcast %255 : vector<64x1xf32> to vector<64x16xf32>
    %257 = arith.mulf %252, %256 : vector<64x16xf32>
    %258 = arith.truncf %257 : vector<64x16xf32> to vector<64x16xbf16>
    %cst_129 = arith.constant dense<0.000000e+00> : vector<64x32xf32>
    %259 = tpu.matmul %258, %225, %cst_129 {dimension_numbers = #tpu.dot_dimension_numbers<[1], [0], [0], [1], [0, 0, 1, 1], [], []>} : vector<64x16xbf16>, vector<16x32xbf16>, vector<64x32xf32> -> vector<64x32xf32>
    %260 = vector.extract_strided_slice %259 {offsets = [0, 0], sizes = [16, 32], strides = [1, 1]} : vector<64x32xf32> to vector<16x32xf32>
    %c0_130 = arith.constant 0 : index
    %c0_131 = arith.constant 0 : index
    %c0_132 = arith.constant 0 : index
    %261 = vector.load %arg5[%c0_130, %c0_131, %c0_132] : memref<4x1x32xf32, #tpu.memory_space<vmem>>, vector<1x1x32xf32>
    %262 = vector.shape_cast %261 : vector<1x1x32xf32> to vector<1x32xf32>
    %263 = vector.broadcast %262 : vector<1x32xf32> to vector<16x32xf32>
    %264 = arith.mulf %260, %263 : vector<16x32xf32>
    %265 = vector.extract_strided_slice %259 {offsets = [16, 0], sizes = [16, 32], strides = [1, 1]} : vector<64x32xf32> to vector<16x32xf32>
    %c1_133 = arith.constant 1 : index
    %c0_134 = arith.constant 0 : index
    %c0_135 = arith.constant 0 : index
    %266 = vector.load %arg5[%c1_133, %c0_134, %c0_135] : memref<4x1x32xf32, #tpu.memory_space<vmem>>, vector<1x1x32xf32>
    %267 = vector.shape_cast %266 : vector<1x1x32xf32> to vector<1x32xf32>
    %268 = vector.broadcast %267 : vector<1x32xf32> to vector<16x32xf32>
    %269 = arith.mulf %265, %268 : vector<16x32xf32>
    %270 = arith.addf %264, %269 : vector<16x32xf32>
    %271 = vector.extract_strided_slice %259 {offsets = [32, 0], sizes = [16, 32], strides = [1, 1]} : vector<64x32xf32> to vector<16x32xf32>
    %c2_136 = arith.constant 2 : index
    %c0_137 = arith.constant 0 : index
    %c0_138 = arith.constant 0 : index
    %272 = vector.load %arg5[%c2_136, %c0_137, %c0_138] : memref<4x1x32xf32, #tpu.memory_space<vmem>>, vector<1x1x32xf32>
    %273 = vector.shape_cast %272 : vector<1x1x32xf32> to vector<1x32xf32>
    %274 = vector.broadcast %273 : vector<1x32xf32> to vector<16x32xf32>
    %275 = arith.mulf %271, %274 : vector<16x32xf32>
    %276 = arith.addf %270, %275 : vector<16x32xf32>
    %277 = vector.extract_strided_slice %259 {offsets = [48, 0], sizes = [16, 32], strides = [1, 1]} : vector<64x32xf32> to vector<16x32xf32>
    %c3_139 = arith.constant 3 : index
    %c0_140 = arith.constant 0 : index
    %c0_141 = arith.constant 0 : index
    %278 = vector.load %arg5[%c3_139, %c0_140, %c0_141] : memref<4x1x32xf32, #tpu.memory_space<vmem>>, vector<1x1x32xf32>
    %279 = vector.shape_cast %278 : vector<1x1x32xf32> to vector<1x32xf32>
    %280 = vector.broadcast %279 : vector<1x32xf32> to vector<16x32xf32>
    %281 = arith.mulf %277, %280 : vector<16x32xf32>
    %282 = arith.addf %276, %281 : vector<16x32xf32>
    %283 = arith.truncf %282 : vector<16x32xf32> to vector<16x32xbf16>
    %c1_142 = arith.constant 1 : index
    %c0_143 = arith.constant 0 : index
    %c0_144 = arith.constant 0 : index
    %284 = vector.load %arg10[%c1_142, %c0_143, %c0_144] : memref<2x32x32xbf16, #tpu.memory_space<vmem>>, vector<1x32x32xbf16>
    %285 = vector.shape_cast %284 : vector<1x32x32xbf16> to vector<32x32xbf16>
    %cst_145 = arith.constant dense<0.000000e+00> : vector<16x32xf32>
    %286 = tpu.matmul %283, %285, %cst_145 {dimension_numbers = #tpu.dot_dimension_numbers<[1], [0], [0], [1], [0, 0, 1, 1], [], []>} : vector<16x32xbf16>, vector<32x32xbf16>, vector<16x32xf32> -> vector<16x32xf32>
    %c1_146 = arith.constant 1 : index
    %c0_147 = arith.constant 0 : index
    %c0_148 = arith.constant 0 : index
    %287 = vector.load %arg11[%c1_146, %c0_147, %c0_148] : memref<2x1x32xf32, #tpu.memory_space<vmem>>, vector<1x1x32xf32>
    %288 = vector.shape_cast %287 : vector<1x1x32xf32> to vector<1x32xf32>
    %289 = vector.broadcast %288 : vector<1x32xf32> to vector<16x32xf32>
    %290 = arith.addf %286, %289 : vector<16x32xf32>
    %291 = arith.addf %290, %212 : vector<16x32xf32>
    %c1_149 = arith.constant 1 : index
    %c0_150 = arith.constant 0 : index
    %c0_151 = arith.constant 0 : index
    %292 = vector.load %arg12[%c1_149, %c0_150, %c0_151] : memref<2x1x32xf32, #tpu.memory_space<vmem>>, vector<1x1x32xf32>
    %293 = vector.shape_cast %292 : vector<1x1x32xf32> to vector<1x32xf32>
    %c1_152 = arith.constant 1 : index
    %c0_153 = arith.constant 0 : index
    %c0_154 = arith.constant 0 : index
    %294 = vector.load %arg13[%c1_152, %c0_153, %c0_154] : memref<2x1x32xf32, #tpu.memory_space<vmem>>, vector<1x1x32xf32>
    %295 = vector.shape_cast %294 : vector<1x1x32xf32> to vector<1x32xf32>
    %cst_155 = arith.constant dense<0.000000e+00> : vector<16xf32>
    %296 = vector.multi_reduction <add>, %291, %cst_155 [1] : vector<16x32xf32> to vector<16xf32>
    %297 = vector.shape_cast %296 : vector<16xf32> to vector<16x1xf32>
    %cst_156 = arith.constant 3.200000e+01 : f32
    %298 = vector.broadcast %cst_156 : f32 to vector<16x1xf32>
    %299 = arith.divf %297, %298 : vector<16x1xf32>
    %300 = vector.broadcast %299 : vector<16x1xf32> to vector<16x32xf32>
    %301 = arith.subf %291, %300 : vector<16x32xf32>
    %302 = arith.mulf %301, %301 : vector<16x32xf32>
    %cst_157 = arith.constant dense<0.000000e+00> : vector<16xf32>
    %303 = vector.multi_reduction <add>, %302, %cst_157 [1] : vector<16x32xf32> to vector<16xf32>
    %304 = vector.shape_cast %303 : vector<16xf32> to vector<16x1xf32>
    %cst_158 = arith.constant 3.200000e+01 : f32
    %305 = vector.broadcast %cst_158 : f32 to vector<16x1xf32>
    %306 = arith.divf %304, %305 : vector<16x1xf32>
    %cst_159 = arith.constant 9.99999996E-13 : f32
    %307 = vector.broadcast %cst_159 : f32 to vector<16x1xf32>
    %308 = arith.addf %306, %307 : vector<16x1xf32>
    %309 = math.rsqrt %308 : vector<16x1xf32>
    %310 = vector.broadcast %309 : vector<16x1xf32> to vector<16x32xf32>
    %311 = arith.mulf %301, %310 : vector<16x32xf32>
    %312 = vector.broadcast %293 : vector<1x32xf32> to vector<16x32xf32>
    %313 = arith.mulf %312, %311 : vector<16x32xf32>
    %314 = vector.broadcast %295 : vector<1x32xf32> to vector<16x32xf32>
    %315 = arith.addf %313, %314 : vector<16x32xf32>
    %316 = arith.truncf %315 : vector<16x32xf32> to vector<16x32xbf16>
    %c1_160 = arith.constant 1 : index
    %c0_161 = arith.constant 0 : index
    %c0_162 = arith.constant 0 : index
    %317 = vector.load %arg14[%c1_160, %c0_161, %c0_162] : memref<2x32x64xbf16, #tpu.memory_space<vmem>>, vector<1x32x64xbf16>
    %318 = vector.shape_cast %317 : vector<1x32x64xbf16> to vector<32x64xbf16>
    %cst_163 = arith.constant dense<0.000000e+00> : vector<16x64xf32>
    %319 = tpu.matmul %316, %318, %cst_163 {dimension_numbers = #tpu.dot_dimension_numbers<[1], [0], [0], [1], [0, 0, 1, 1], [], []>} : vector<16x32xbf16>, vector<32x64xbf16>, vector<16x64xf32> -> vector<16x64xf32>
    %c1_164 = arith.constant 1 : index
    %c0_165 = arith.constant 0 : index
    %c0_166 = arith.constant 0 : index
    %320 = vector.load %arg15[%c1_164, %c0_165, %c0_166] : memref<2x1x64xf32, #tpu.memory_space<vmem>>, vector<1x1x64xf32>
    %321 = vector.shape_cast %320 : vector<1x1x64xf32> to vector<1x64xf32>
    %322 = vector.broadcast %321 : vector<1x64xf32> to vector<16x64xf32>
    %323 = arith.addf %319, %322 : vector<16x64xf32>
    %cst_167 = arith.constant 5.000000e-01 : f32
    %324 = vector.broadcast %cst_167 : f32 to vector<16x64xf32>
    %325 = arith.mulf %323, %324 : vector<16x64xf32>
    %cst_168 = arith.constant 0.707106769 : f32
    %326 = vector.broadcast %cst_168 : f32 to vector<16x64xf32>
    %327 = arith.mulf %323, %326 : vector<16x64xf32>
    %328 = math.absf %327 : vector<16x64xf32>
    %cst_169 = arith.constant 0.327591091 : f32
    %329 = vector.broadcast %cst_169 : f32 to vector<16x64xf32>
    %330 = arith.mulf %329, %328 : vector<16x64xf32>
    %cst_170 = arith.constant 1.000000e+00 : f32
    %331 = vector.broadcast %cst_170 : f32 to vector<16x64xf32>
    %332 = arith.addf %331, %330 : vector<16x64xf32>
    %cst_171 = arith.constant 1.000000e+00 : f32
    %333 = vector.broadcast %cst_171 : f32 to vector<16x64xf32>
    %334 = arith.divf %333, %332 : vector<16x64xf32>
    %cst_172 = arith.constant 1.06140542 : f32
    %335 = vector.broadcast %cst_172 : f32 to vector<16x64xf32>
    %336 = arith.mulf %335, %334 : vector<16x64xf32>
    %cst_173 = arith.constant -1.45315206 : f32
    %337 = vector.broadcast %cst_173 : f32 to vector<16x64xf32>
    %338 = arith.addf %336, %337 : vector<16x64xf32>
    %339 = arith.mulf %338, %334 : vector<16x64xf32>
    %cst_174 = arith.constant 1.42141378 : f32
    %340 = vector.broadcast %cst_174 : f32 to vector<16x64xf32>
    %341 = arith.addf %339, %340 : vector<16x64xf32>
    %342 = arith.mulf %341, %334 : vector<16x64xf32>
    %cst_175 = arith.constant -0.284496725 : f32
    %343 = vector.broadcast %cst_175 : f32 to vector<16x64xf32>
    %344 = arith.addf %342, %343 : vector<16x64xf32>
    %345 = arith.mulf %344, %334 : vector<16x64xf32>
    %cst_176 = arith.constant 0.254829586 : f32
    %346 = vector.broadcast %cst_176 : f32 to vector<16x64xf32>
    %347 = arith.addf %345, %346 : vector<16x64xf32>
    %348 = arith.mulf %347, %334 : vector<16x64xf32>
    %cst_177 = arith.constant 0.000000e+00 : f32
    %349 = vector.broadcast %cst_177 : f32 to vector<16x64xf32>
    %350 = arith.subf %349, %328 : vector<16x64xf32>
    %351 = arith.mulf %350, %328 : vector<16x64xf32>
    %352 = math.exp %351 : vector<16x64xf32>
    %353 = arith.mulf %348, %352 : vector<16x64xf32>
    %cst_178 = arith.constant 1.000000e+00 : f32
    %354 = vector.broadcast %cst_178 : f32 to vector<16x64xf32>
    %355 = arith.subf %354, %353 : vector<16x64xf32>
    %cst_179 = arith.constant 0.000000e+00 : f32
    %356 = vector.broadcast %cst_179 : f32 to vector<16x64xf32>
    %357 = arith.cmpf oge, %327, %356 : vector<16x64xf32>
    %cst_180 = arith.constant 0.000000e+00 : f32
    %358 = vector.broadcast %cst_180 : f32 to vector<16x64xf32>
    %359 = arith.subf %358, %355 : vector<16x64xf32>
    %360 = arith.select %357, %355, %359 : vector<16x64xi1>, vector<16x64xf32>
    %cst_181 = arith.constant 1.000000e+00 : f32
    %361 = vector.broadcast %cst_181 : f32 to vector<16x64xf32>
    %362 = arith.addf %361, %360 : vector<16x64xf32>
    %363 = arith.mulf %325, %362 : vector<16x64xf32>
    %364 = arith.truncf %363 : vector<16x64xf32> to vector<16x64xbf16>
    %c1_182 = arith.constant 1 : index
    %c0_183 = arith.constant 0 : index
    %c0_184 = arith.constant 0 : index
    %365 = vector.load %arg16[%c1_182, %c0_183, %c0_184] : memref<2x64x32xbf16, #tpu.memory_space<vmem>>, vector<1x64x32xbf16>
    %366 = vector.shape_cast %365 : vector<1x64x32xbf16> to vector<64x32xbf16>
    %cst_185 = arith.constant dense<0.000000e+00> : vector<16x32xf32>
    %367 = tpu.matmul %364, %366, %cst_185 {dimension_numbers = #tpu.dot_dimension_numbers<[1], [0], [0], [1], [0, 0, 1, 1], [], []>} : vector<16x64xbf16>, vector<64x32xbf16>, vector<16x32xf32> -> vector<16x32xf32>
    %c1_186 = arith.constant 1 : index
    %c0_187 = arith.constant 0 : index
    %c0_188 = arith.constant 0 : index
    %368 = vector.load %arg17[%c1_186, %c0_187, %c0_188] : memref<2x1x32xf32, #tpu.memory_space<vmem>>, vector<1x1x32xf32>
    %369 = vector.shape_cast %368 : vector<1x1x32xf32> to vector<1x32xf32>
    %370 = vector.broadcast %369 : vector<1x32xf32> to vector<16x32xf32>
    %371 = arith.addf %367, %370 : vector<16x32xf32>
    %372 = arith.addf %371, %315 : vector<16x32xf32>
    %c1_189 = arith.constant 1 : index
    %c0_190 = arith.constant 0 : index
    %c0_191 = arith.constant 0 : index
    %373 = vector.load %arg18[%c1_189, %c0_190, %c0_191] : memref<2x1x32xf32, #tpu.memory_space<vmem>>, vector<1x1x32xf32>
    %374 = vector.shape_cast %373 : vector<1x1x32xf32> to vector<1x32xf32>
    %c1_192 = arith.constant 1 : index
    %c0_193 = arith.constant 0 : index
    %c0_194 = arith.constant 0 : index
    %375 = vector.load %arg19[%c1_192, %c0_193, %c0_194] : memref<2x1x32xf32, #tpu.memory_space<vmem>>, vector<1x1x32xf32>
    %376 = vector.shape_cast %375 : vector<1x1x32xf32> to vector<1x32xf32>
    %cst_195 = arith.constant dense<0.000000e+00> : vector<16xf32>
    %377 = vector.multi_reduction <add>, %372, %cst_195 [1] : vector<16x32xf32> to vector<16xf32>
    %378 = vector.shape_cast %377 : vector<16xf32> to vector<16x1xf32>
    %cst_196 = arith.constant 3.200000e+01 : f32
    %379 = vector.broadcast %cst_196 : f32 to vector<16x1xf32>
    %380 = arith.divf %378, %379 : vector<16x1xf32>
    %381 = vector.broadcast %380 : vector<16x1xf32> to vector<16x32xf32>
    %382 = arith.subf %372, %381 : vector<16x32xf32>
    %383 = arith.mulf %382, %382 : vector<16x32xf32>
    %cst_197 = arith.constant dense<0.000000e+00> : vector<16xf32>
    %384 = vector.multi_reduction <add>, %383, %cst_197 [1] : vector<16x32xf32> to vector<16xf32>
    %385 = vector.shape_cast %384 : vector<16xf32> to vector<16x1xf32>
    %cst_198 = arith.constant 3.200000e+01 : f32
    %386 = vector.broadcast %cst_198 : f32 to vector<16x1xf32>
    %387 = arith.divf %385, %386 : vector<16x1xf32>
    %cst_199 = arith.constant 9.99999996E-13 : f32
    %388 = vector.broadcast %cst_199 : f32 to vector<16x1xf32>
    %389 = arith.addf %387, %388 : vector<16x1xf32>
    %390 = math.rsqrt %389 : vector<16x1xf32>
    %391 = vector.broadcast %390 : vector<16x1xf32> to vector<16x32xf32>
    %392 = arith.mulf %382, %391 : vector<16x32xf32>
    %393 = vector.broadcast %374 : vector<1x32xf32> to vector<16x32xf32>
    %394 = arith.mulf %393, %392 : vector<16x32xf32>
    %395 = vector.broadcast %376 : vector<1x32xf32> to vector<16x32xf32>
    %396 = arith.addf %394, %395 : vector<16x32xf32>
    %397 = arith.truncf %396 : vector<16x32xf32> to vector<16x32xbf16>
    %c0_200 = arith.constant 0 : index
    %c0_201 = arith.constant 0 : index
    %398 = vector.load %arg20[%c0_200, %c0_201] : memref<32x2xbf16, #tpu.memory_space<vmem>>, vector<32x2xbf16>
    %cst_202 = arith.constant dense<0.000000e+00> : vector<16x2xf32>
    %399 = tpu.matmul %397, %398, %cst_202 {dimension_numbers = #tpu.dot_dimension_numbers<[1], [0], [0], [1], [0, 0, 1, 1], [], []>} : vector<16x32xbf16>, vector<32x2xbf16>, vector<16x2xf32> -> vector<16x2xf32>
    %c0_203 = arith.constant 0 : index
    %c0_204 = arith.constant 0 : index
    %400 = vector.load %arg21[%c0_203, %c0_204] : memref<1x2xf32, #tpu.memory_space<vmem>>, vector<1x2xf32>
    %401 = vector.broadcast %400 : vector<1x2xf32> to vector<16x2xf32>
    %402 = arith.addf %399, %401 : vector<16x2xf32>
    %c0_205 = arith.constant 0 : index
    %c0_206 = arith.constant 0 : index
    %403 = vector.load %arg22[%c0_205, %c0_206] : memref<16x2xf32, #tpu.memory_space<vmem>>, vector<16x2xf32>
    tpu.vector_store %arg22[%c0_205, %c0_206], %402 {strides = array<i32>} : memref<16x2xf32, #tpu.memory_space<vmem>>, vector<16x2xf32>,
    return
  }
  func.func @transform_0(%arg0: i32) -> (i32, i32) {
    %c0_i32 = arith.constant 0 : i32
    %c0_i32_0 = arith.constant 0 : i32
    %c0_i32_1 = arith.constant 0 : i32
    return %c0_i32, %c0_i32_0 : i32, i32
  }
  func.func @transform_1(%arg0: i32) -> (i32, i32) {
    %c0_i32 = arith.constant 0 : i32
    %c0_i32_0 = arith.constant 0 : i32
    %c0_i32_1 = arith.constant 0 : i32
    return %c0_i32, %c0_i32_0 : i32, i32
  }
  func.func @transform_2(%arg0: i32) -> (i32, i32) {
    %c0_i32 = arith.constant 0 : i32
    %c0_i32_0 = arith.constant 0 : i32
    %c0_i32_1 = arith.constant 0 : i32
    return %c0_i32, %c0_i32_0 : i32, i32
  }
  func.func @transform_3(%arg0: i32) -> (i32, i32) {
    %c0_i32 = arith.constant 0 : i32
    %c0_i32_0 = arith.constant 0 : i32
    %c0_i32_1 = arith.constant 0 : i32
    return %c0_i32, %c0_i32_0 : i32, i32
  }
  func.func @transform_4(%arg0: i32) -> (i32, i32, i32) {
    %c0_i32 = arith.constant 0 : i32
    %c0_i32_0 = arith.constant 0 : i32
    %c0_i32_1 = arith.constant 0 : i32
    %c0_i32_2 = arith.constant 0 : i32
    return %c0_i32, %c0_i32_0, %c0_i32_1 : i32, i32, i32
  }
  func.func @transform_5(%arg0: i32) -> (i32, i32) {
    %c0_i32 = arith.constant 0 : i32
    %c0_i32_0 = arith.constant 0 : i32
    %c0_i32_1 = arith.constant 0 : i32
    return %c0_i32, %c0_i32_0 : i32, i32
  }
  func.func @transform_6(%arg0: i32) -> (i32, i32) {
    %c0_i32 = arith.constant 0 : i32
    %c0_i32_0 = arith.constant 0 : i32
    %c0_i32_1 = arith.constant 0 : i32
    return %c0_i32, %c0_i32_0 : i32, i32
  }
  func.func @transform_7(%arg0: i32) -> (i32, i32, i32) {
    %c0_i32 = arith.constant 0 : i32
    %c0_i32_0 = arith.constant 0 : i32
    %c0_i32_1 = arith.constant 0 : i32
    %c0_i32_2 = arith.constant 0 : i32
    return %c0_i32, %c0_i32_0, %c0_i32_1 : i32, i32, i32
  }
  func.func @transform_8(%arg0: i32) -> (i32, i32, i32) {
    %c0_i32 = arith.constant 0 : i32
    %c0_i32_0 = arith.constant 0 : i32
    %c0_i32_1 = arith.constant 0 : i32
    %c0_i32_2 = arith.constant 0 : i32
    return %c0_i32, %c0_i32_0, %c0_i32_1 : i32, i32, i32
  }
  func.func @transform_9(%arg0: i32) -> (i32, i32, i32) {
    %c0_i32 = arith.constant 0 : i32
    %c0_i32_0 = arith.constant 0 : i32
    %c0_i32_1 = arith.constant 0 : i32
    %c0_i32_2 = arith.constant 0 : i32
    return %c0_i32, %c0_i32_0, %c0_i32_1 : i32, i32, i32
  }
  func.func @transform_10(%arg0: i32) -> (i32, i32, i32) {
    %c0_i32 = arith.constant 0 : i32
    %c0_i32_0 = arith.constant 0 : i32
    %c0_i32_1 = arith.constant 0 : i32
    %c0_i32_2 = arith.constant 0 : i32
    return %c0_i32, %c0_i32_0, %c0_i32_1 : i32, i32, i32
  }
  func.func @transform_11(%arg0: i32) -> (i32, i32, i32) {
    %c0_i32 = arith.constant 0 : i32
    %c0_i32_0 = arith.constant 0 : i32
    %c0_i32_1 = arith.constant 0 : i32
    %c0_i32_2 = arith.constant 0 : i32
    return %c0_i32, %c0_i32_0, %c0_i32_1 : i32, i32, i32
  }
  func.func @transform_12(%arg0: i32) -> (i32, i32, i32) {
    %c0_i32 = arith.constant 0 : i32
    %c0_i32_0 = arith.constant 0 : i32
    %c0_i32_1 = arith.constant 0 : i32
    %c0_i32_2 = arith.constant 0 : i32
    return %c0_i32, %c0_i32_0, %c0_i32_1 : i32, i32, i32
  }
  func.func @transform_13(%arg0: i32) -> (i32, i32, i32) {
    %c0_i32 = arith.constant 0 : i32
    %c0_i32_0 = arith.constant 0 : i32
    %c0_i32_1 = arith.constant 0 : i32
    %c0_i32_2 = arith.constant 0 : i32
    return %c0_i32, %c0_i32_0, %c0_i32_1 : i32, i32, i32
  }
  func.func @transform_14(%arg0: i32) -> (i32, i32, i32) {
    %c0_i32 = arith.constant 0 : i32
    %c0_i32_0 = arith.constant 0 : i32
    %c0_i32_1 = arith.constant 0 : i32
    %c0_i32_2 = arith.constant 0 : i32
    return %c0_i32, %c0_i32_0, %c0_i32_1 : i32, i32, i32
  }
  func.func @transform_15(%arg0: i32) -> (i32, i32, i32) {
    %c0_i32 = arith.constant 0 : i32
    %c0_i32_0 = arith.constant 0 : i32
    %c0_i32_1 = arith.constant 0 : i32
    %c0_i32_2 = arith.constant 0 : i32
    return %c0_i32, %c0_i32_0, %c0_i32_1 : i32, i32, i32
  }
  func.func @transform_16(%arg0: i32) -> (i32, i32, i32) {
    %c0_i32 = arith.constant 0 : i32
    %c0_i32_0 = arith.constant 0 : i32
    %c0_i32_1 = arith.constant 0 : i32
    %c0_i32_2 = arith.constant 0 : i32
    return %c0_i32, %c0_i32_0, %c0_i32_1 : i32, i32, i32
  }
  func.func @transform_17(%arg0: i32) -> (i32, i32, i32) {
    %c0_i32 = arith.constant 0 : i32
    %c0_i32_0 = arith.constant 0 : i32
    %c0_i32_1 = arith.constant 0 : i32
    %c0_i32_2 = arith.constant 0 : i32
    return %c0_i32, %c0_i32_0, %c0_i32_1 : i32, i32, i32
  }
  func.func @transform_18(%arg0: i32) -> (i32, i32, i32) {
    %c0_i32 = arith.constant 0 : i32
    %c0_i32_0 = arith.constant 0 : i32
    %c0_i32_1 = arith.constant 0 : i32
    %c0_i32_2 = arith.constant 0 : i32
    return %c0_i32, %c0_i32_0, %c0_i32_1 : i32, i32, i32
  }
  func.func @transform_19(%arg0: i32) -> (i32, i32) {
    %c0_i32 = arith.constant 0 : i32
    %c0_i32_0 = arith.constant 0 : i32
    %c0_i32_1 = arith.constant 0 : i32
    return %c0_i32, %c0_i32_0 : i32, i32
  }
  func.func @transform_20(%arg0: i32) -> (i32, i32) {
    %c0_i32 = arith.constant 0 : i32
    %c0_i32_0 = arith.constant 0 : i32
    %c0_i32_1 = arith.constant 0 : i32
    return %c0_i32, %c0_i32_0 : i32, i32
  }
  func.func @transform_21(%arg0: i32) -> (i32, i32) {
    %c0_i32 = arith.constant 0 : i32
    %c0_i32_0 = arith.constant 0 : i32
    %c0_i32_1 = arith.constant 0 : i32
    return %c0_i32, %c0_i32_0 : i32, i32
  }
}

</mosaic_0001>

<llo_original>
// kernel: tpu_custom_call.1
$region0: #{tpu_custom_call.1}
  #allocation0 [shape = 'u32[]', space=smem, size = 0x4, offset = 0x4, fixed_abs, tag = 'smem constant byte address 0x4 - core index']
  #allocation1 [shape = 'u32[144,128]{1,0:T(1,128)}', space=vmem, size = 0x12000, scoped, tag = 'internal scratch']
  %s0 = inlined_call_operand.vmem [shape: f32[16,32], index: 0, kind: input, shape index: {}]
  %s1 = inlined_call_operand.vmem [shape: f32[8,32], index: 1, kind: input, shape index: {}]
  %s2 = inlined_call_operand.vmem [shape: f32[16,32], index: 2, kind: input, shape index: {}]
  %s3 = inlined_call_operand.vmem [shape: f32[64,16], index: 3, kind: input, shape index: {}]
  %s4 = inlined_call_operand.vmem [shape: f32[4,1,32], index: 4, kind: input, shape index: {}]
  %s5 = inlined_call_operand.vmem [shape: f32[1,32], index: 5, kind: input, shape index: {}]
  %s6 = inlined_call_operand.vmem [shape: f32[1,32], index: 6, kind: input, shape index: {}]
  %s7 = inlined_call_operand.vmem [shape: bf16[2,32,96], index: 7, kind: input, shape index: {}]
  %s8 = inlined_call_operand.vmem [shape: f32[2,1,96], index: 8, kind: input, shape index: {}]
  %s9 = inlined_call_operand.vmem [shape: bf16[2,32,32], index: 9, kind: input, shape index: {}]
  %s10 = inlined_call_operand.vmem [shape: f32[2,1,32], index: 10, kind: input, shape index: {}]
  %s11 = inlined_call_operand.vmem [shape: f32[2,1,32], index: 11, kind: input, shape index: {}]
  %s12 = inlined_call_operand.vmem [shape: f32[2,1,32], index: 12, kind: input, shape index: {}]
  %s13 = inlined_call_operand.vmem [shape: bf16[2,32,64], index: 13, kind: input, shape index: {}]
  %s14 = inlined_call_operand.vmem [shape: f32[2,1,64], index: 14, kind: input, shape index: {}]
  %s15 = inlined_call_operand.vmem [shape: bf16[2,64,32], index: 15, kind: input, shape index: {}]
  %s16 = inlined_call_operand.vmem [shape: f32[2,1,32], index: 16, kind: input, shape index: {}]
  %s17 = inlined_call_operand.vmem [shape: f32[2,1,32], index: 17, kind: input, shape index: {}]
  %s18 = inlined_call_operand.vmem [shape: f32[2,1,32], index: 18, kind: input, shape index: {}]
  %s19 = inlined_call_operand.vmem [shape: bf16[32,2], index: 19, kind: input, shape index: {}]
  %s20 = inlined_call_operand.vmem [shape: f32[1,2], index: 20, kind: input, shape index: {}]
  %s21 = inlined_call_operand.vmem [shape: f32[16,2], index: 21, kind: output, shape index: {}]
  %s22 = sld [smem:[#allocation0]]
  $region94: #{tpu_custom_call.1} parent=0
    _
  %s24 = ssub.s32 1, %s22
  %s25 = scalar_select 0, %s24, %s22
  // Predicated region
  $region2: #{tpu_custom_call.1} parent=0 // pred_check
    _
  $region3: #{tpu_custom_call.1} parent=0 // pred_check_branch
    %27 = sbr.rel (0) target = $region5
  $region4: #{tpu_custom_call.1} parent=0 // pred_region
    _
  $region5: #{tpu_custom_call.1} parent=0 // pred_fallthru
    _
  // Predicated region
  $region6: #{tpu_custom_call.1} parent=0 // pred_check
    _
  $region7: #{tpu_custom_call.1} parent=0 // pred_check_branch
    %29 = sbr.rel (0) target = $region9
  $region8: #{tpu_custom_call.1} parent=0 // pred_region
    _
  $region9: #{tpu_custom_call.1} parent=0 // pred_fallthru
    _
  // Predicated region
  $region10: #{tpu_custom_call.1} parent=0 // pred_check
    _
  $region11: #{tpu_custom_call.1} parent=0 // pred_check_branch
    %31 = sbr.rel (0) target = $region13
  $region12: #{tpu_custom_call.1} parent=0 // pred_region
    _
  $region13: #{tpu_custom_call.1} parent=0 // pred_fallthru
    _
  // Predicated region
  $region14: #{tpu_custom_call.1} parent=0 // pred_check
    _
  $region15: #{tpu_custom_call.1} parent=0 // pred_check_branch
    %33 = sbr.rel (0) target = $region17
  $region16: #{tpu_custom_call.1} parent=0 // pred_region
    _
  $region17: #{tpu_custom_call.1} parent=0 // pred_fallthru
    _
  // Predicated region
  $region18: #{tpu_custom_call.1} parent=0 // pred_check
    _
  $region19: #{tpu_custom_call.1} parent=0 // pred_check_branch
    %35 = sbr.rel (0) target = $region21
  $region20: #{tpu_custom_call.1} parent=0 // pred_region
    _
  $region21: #{tpu_custom_call.1} parent=0 // pred_fallthru
    _
  // Predicated region
  $region22: #{tpu_custom_call.1} parent=0 // pred_check
    _
  $region23: #{tpu_custom_call.1} parent=0 // pred_check_branch
    %37 = sbr.rel (0) target = $region25
  $region24: #{tpu_custom_call.1} parent=0 // pred_region
    _
  $region25: #{tpu_custom_call.1} parent=0 // pred_fallthru
    _
  // Predicated region
  $region26: #{tpu_custom_call.1} parent=0 // pred_check
    _
  $region27: #{tpu_custom_call.1} parent=0 // pred_check_branch
    %39 = sbr.rel (0) target = $region29
  $region28: #{tpu_custom_call.1} parent=0 // pred_region
    _
  $region29: #{tpu_custom_call.1} parent=0 // pred_fallthru
    _
  // Predicated region
  $region30: #{tpu_custom_call.1} parent=0 // pred_check
    _
  $region31: #{tpu_custom_call.1} parent=0 // pred_check_branch
    %41 = sbr.rel (0) target = $region33
  $region32: #{tpu_custom_call.1} parent=0 // pred_region
    _
  $region33: #{tpu_custom_call.1} parent=0 // pred_fallthru
    _
  // Predicated region
  $region34: #{tpu_custom_call.1} parent=0 // pred_check
    _
  $region35: #{tpu_custom_call.1} parent=0 // pred_check_branch
    %43 = sbr.rel (0) target = $region37
  $region36: #{tpu_custom_call.1} parent=0 // pred_region
    _
  $region37: #{tpu_custom_call.1} parent=0 // pred_fallthru
    _
  // Predicated region
  $region38: #{tpu_custom_call.1} parent=0 // pred_check
    _
  $region39: #{tpu_custom_call.1} parent=0 // pred_check_branch
    %45 = sbr.rel (0) target = $region41
  $region40: #{tpu_custom_call.1} parent=0 // pred_region
    _
  $region41: #{tpu_custom_call.1} parent=0 // pred_fallthru
    _
  // Predicated region
  $region42: #{tpu_custom_call.1} parent=0 // pred_check
    _
  $region43: #{tpu_custom_call.1} parent=0 // pred_check_branch
    %47 = sbr.rel (0) target = $region45
  $region44: #{tpu_custom_call.1} parent=0 // pred_region
    _
  $region45: #{tpu_custom_call.1} parent=0 // pred_fallthru
    _
  // Predicated region
  $region46: #{tpu_custom_call.1} parent=0 // pred_check
    _
  $region47: #{tpu_custom_call.1} parent=0 // pred_check_branch
    %49 = sbr.rel (0) target = $region49
  $region48: #{tpu_custom_call.1} parent=0 // pred_region
    _
  $region49: #{tpu_custom_call.1} parent=0 // pred_fallthru
    _
  // Predicated region
  $region50: #{tpu_custom_call.1} parent=0 // pred_check
    _
  $region51: #{tpu_custom_call.1} parent=0 // pred_check_branch
    %51 = sbr.rel (0) target = $region53
  $region52: #{tpu_custom_call.1} parent=0 // pred_region
    _
  $region53: #{tpu_custom_call.1} parent=0 // pred_fallthru
    _
  // Predicated region
  $region54: #{tpu_custom_call.1} parent=0 // pred_check
    _
  $region55: #{tpu_custom_call.1} parent=0 // pred_check_branch
    %53 = sbr.rel (0) target = $region57
  $region56: #{tpu_custom_call.1} parent=0 // pred_region
    _
  $region57: #{tpu_custom_call.1} parent=0 // pred_fallthru
    _
  // Predicated region
  $region58: #{tpu_custom_call.1} parent=0 // pred_check
    _
  $region59: #{tpu_custom_call.1} parent=0 // pred_check_branch
    %55 = sbr.rel (0) target = $region61
  $region60: #{tpu_custom_call.1} parent=0 // pred_region
    _
  $region61: #{tpu_custom_call.1} parent=0 // pred_fallthru
    _
  // Predicated region
  $region62: #{tpu_custom_call.1} parent=0 // pred_check
    _
  $region63: #{tpu_custom_call.1} parent=0 // pred_check_branch
    %57 = sbr.rel (0) target = $region65
  $region64: #{tpu_custom_call.1} parent=0 // pred_region
    _
  $region65: #{tpu_custom_call.1} parent=0 // pred_fallthru
    _
  // Predicated region
  $region66: #{tpu_custom_call.1} parent=0 // pred_check
    _
  $region67: #{tpu_custom_call.1} parent=0 // pred_check_branch
    %59 = sbr.rel (0) target = $region69
  $region68: #{tpu_custom_call.1} parent=0 // pred_region
    _
  $region69: #{tpu_custom_call.1} parent=0 // pred_fallthru
    _
  // Predicated region
  $region70: #{tpu_custom_call.1} parent=0 // pred_check
    _
  $region71: #{tpu_custom_call.1} parent=0 // pred_check_branch
    %61 = sbr.rel (0) target = $region73
  $region72: #{tpu_custom_call.1} parent=0 // pred_region
    _
  $region73: #{tpu_custom_call.1} parent=0 // pred_fallthru
    _
  // Predicated region
  $region74: #{tpu_custom_call.1} parent=0 // pred_check
    _
  $region75: #{tpu_custom_call.1} parent=0 // pred_check_branch
    %63 = sbr.rel (0) target = $region77
  $region76: #{tpu_custom_call.1} parent=0 // pred_region
    _
  $region77: #{tpu_custom_call.1} parent=0 // pred_fallthru
    _
  // Predicated region
  $region78: #{tpu_custom_call.1} parent=0 // pred_check
    _
  $region79: #{tpu_custom_call.1} parent=0 // pred_check_branch
    %65 = sbr.rel (0) target = $region81
  $region80: #{tpu_custom_call.1} parent=0 // pred_region
    _
  $region81: #{tpu_custom_call.1} parent=0 // pred_fallthru
    _
  // Predicated region
  $region82: #{tpu_custom_call.1} parent=0 // pred_check
    _
  $region83: #{tpu_custom_call.1} parent=0 // pred_check_branch
    %67 = sbr.rel (0) target = $region85
  $region84: #{tpu_custom_call.1} parent=0 // pred_region
    _
  $region85: #{tpu_custom_call.1} parent=0 // pred_fallthru
    _
  %v69 = vld [vmem:[%s1] sm:$0xff]
  %v70 = vld [vmem:[%s0] sm:$0xff]
  %v71 = vld [vmem:[%s0 + $0x8] sm:$0xff]
  %v72 = vld [vmem:[%s2] sm:$0xff]
  %v73 = vld [vmem:[%s2 + $0x8] sm:$0xff]
  %v74 = vadd.f32 %v70, %v72
  %v75 = vadd.f32 %v71, %v73
  %v76 = vadd.f32 %v74, %v69
  %v77 = vadd.f32 %v75, %v69
  %v78 = vld [vmem:[%s5] sm:$0x1]
  %v79 = vld [vmem:[%s6] sm:$0x1]
  %vm80 = vcmask 261120
  %v81 = vsel %vm80, %v76, 0.0
  %82 = vadd.xlane.f32.xlu0 %v81
  %v83 = vpop.xlane.xlu0 %82
  %v84 = vsel %vm80, %v77, 0.0
  %85 = vadd.xlane.f32.xlu0 %v84
  %v86 = vpop.xlane.xlu0 %85
  %v87 = vrcp.pop 32.0
  %v88 = vmul.f32 %v83, %v87
  %v89 = vmul.f32 %v86, %v87
  %v90 = vsub.f32 %v76, %v88
  %v91 = vsub.f32 %v77, %v89
  %v92 = vmul.f32 %v90, %v90
  %v93 = vmul.f32 %v91, %v91
  %v94 = vsel %vm80, %v92, 0.0
  %95 = vadd.xlane.f32.xlu0 %v94
  %v96 = vpop.xlane.xlu0 %95
  %v97 = vsel %vm80, %v93, 0.0
  %98 = vadd.xlane.f32.xlu0 %v97
  %v99 = vpop.xlane.xlu0 %98
  %v100 = vmul.f32 %v96, %v87
  %v101 = vmul.f32 %v99, %v87
  %v102 = vadd.f32 %v100, 1e-12
  %v103 = vadd.f32 %v101, 1e-12
  %v104 = vrsqrt.pop %v102
  %v105 = vrsqrt.pop %v103
  %v106 = vmul.f32 %v90, %v104
  %v107 = vmul.f32 %v91, %v105
  %v109 = vlaneseq
  %v110 = vshrl.u32 %v109, 7
  %v111 = vsub.s32 0, %v110
  %v112 = vrot.slane %v78, %v111
  %v114 = vmul.f32 %v112, %v106
  %v115 = vmul.f32 %v112, %v107
  %v117 = vlaneseq
  %v118 = vshrl.u32 %v117, 7
  %v119 = vsub.s32 0, %v118
  %v120 = vrot.slane %v79, %v119
  %v122 = vadd.f32 %v114, %v120
  %v123 = vadd.f32 %v115, %v120
  %v124 = vld [vmem:[%s3] sm:$0xff]
  %v125 = vld [vmem:[%s3 + $0x8] sm:$0xff]
  %v126 = vld [vmem:[%s3 + $0x10] sm:$0xff]
  %v127 = vld [vmem:[%s3 + $0x18] sm:$0xff]
  %v128 = vld [vmem:[%s3 + $0x20] sm:$0xff]
  %v129 = vld [vmem:[%s3 + $0x28] sm:$0xff]
  %v130 = vld [vmem:[%s3 + $0x30] sm:$0xff]
  %v131 = vld [vmem:[%s3 + $0x38] sm:$0xff]
  %v132 = vpack.c.bf16 %v123, %v122
  %v133 = vld [vmem:[%s7] sm:$0xf]
  %v134 = vld [vmem:[%s7 + $0x4] sm:$0xf]
  %v135 = vld [vmem:[%s7 + $0x8] sm:$0xf]
  %v136 = vld [vmem:[%s7 + $0xc] sm:$0xf]
  %v137 = vld [vmem:[%s8] sm:$0x1]
  %v139 = vlaneseq
  %v140 = vshrl.u32 %v139, 7
  %v141 = vsub.s32 0, %v140
  %v142 = vrot.slane %v137, %v141
  %v148 = vunpack.c.l.b16 %v133
  %v149 = vunpack.c.l.b16 %v134
  %v150 = vunpack.c.l.b16 %v135
  %v151 = vunpack.c.l.b16 %v136
  %v152 = vpack.c.b16 %v149, %v148
  %v153 = vpack.c.b16 %v151, %v150
  %v157 = vsel %vm80, %v132, 0
  %159 = vmatprep.subr.bf16.mxu0 0
  %160 = vmatpush1.bf16.msra.mxu0 %v152
  %161 = vmatprep.subr.bf16.mxu0 0
  %162 = vmatpush1.bf16.msra.mxu0 %v153
  %163 = vmatprep.subr.bf16.mxu0 0
  %164 = vmatpush1.bf16.msra.mxu0 0
  %165 = vmatprep.subr.bf16.mxu0 0
  %166 = vmatpush1.bf16.msra.mxu0 0
  %167 = vmatprep.subr.bf16.mxu0 0
  %168 = vmatpush1.bf16.msra.mxu0 0
  %169 = vmatprep.subr.bf16.mxu0 0
  %170 = vmatpush1.bf16.msra.mxu0 0
  %171 = vmatprep.subr.bf16.mxu0 0
  %172 = vmatpush1.bf16.msra.mxu0 0
  %173 = vmatprep.subr.bf16.mxu0 0
  %174 = vmatpush1.bf16.msra.mxu0 0
  %175 = vmatprep.subr.bf16.mxu0 0
  %176 = vmatpush1.bf16.msra.mxu0 0
  %177 = vmatprep.subr.bf16.mxu0 0
  %178 = vmatpush1.bf16.msra.mxu0 0
  %179 = vmatprep.subr.bf16.mxu0 0
  %180 = vmatpush1.bf16.msra.mxu0 0
  %181 = vmatprep.subr.bf16.mxu0 0
  %182 = vmatpush1.bf16.msra.mxu0 0
  %183 = vmatprep.subr.bf16.mxu0 0
  %184 = vmatpush1.bf16.msra.mxu0 0
  %185 = vmatprep.subr.bf16.mxu0 0
  %186 = vmatpush1.bf16.msra.mxu0 0
  %187 = vmatprep.subr.bf16.mxu0 0
  %188 = vmatpush1.bf16.msra.mxu0 0
  %189 = vmatprep.subr.bf16.mxu0 0
  %190 = vmatpush1.bf16.msra.mxu0 0
  %191 = vmatprep.mubr.bf16.mxu0 0
  %192 = vmatmul.mubr.bf16.gmra.mrb[0].mxu0 %v157
  %v193 = vpop.f32.mrb[0].mxu0
  %v194 = vadd.f32 %v142, %v193
  %v195 = vpop.f32.mrb[0].mxu0
  %v196 = vpop.f32.mrb[0].mxu0
  %v197 = vadd.f32 %v142, %v196
  %v198 = vpop.f32.mrb[0].mxu0
  %199 = vdwg.mxu0
  %v200 = vpack.c.bf16 %v197, %v194
  %v201 = vld [vmem:[%s4] sm:$0x1]
  %v203 = vlaneseq
  %v204 = vshrl.u32 %v203, 7
  %v205 = vsub.s32 0, %v204
  %v206 = vrot.slane %v201, %v205
  %v208 = vmul.f32 %v194, %v206
  %v209 = vmul.f32 %v197, %v206
  %s210 = scalar_lea.vmem %s4, 1
  %v211 = vld [vmem:[%s210] sm:$0x1]
  %v213 = vlaneseq
  %v214 = vshrl.u32 %v213, 7
  %v215 = vsub.s32 0, %v214
  %v216 = vrot.slane %v211, %v215
  %v218 = vmul.f32 %v194, %v216
  %v219 = vmul.f32 %v197, %v216
  %s220 = scalar_lea.vmem %s4, 2
  %v221 = vld [vmem:[%s220] sm:$0x1]
  %v223 = vlaneseq
  %v224 = vshrl.u32 %v223, 7
  %v225 = vsub.s32 0, %v224
  %v226 = vrot.slane %v221, %v225
  %v228 = vmul.f32 %v194, %v226
  %v229 = vmul.f32 %v197, %v226
  %s230 = scalar_lea.vmem %s4, 3
  %v231 = vld [vmem:[%s230] sm:$0x1]
  %v233 = vlaneseq
  %v234 = vshrl.u32 %v233, 7
  %v235 = vsub.s32 0, %v234
  %v236 = vrot.slane %v231, %v235
  %v238 = vmul.f32 %v194, %v236
  %v239 = vmul.f32 %v197, %v236
  %v240 = vpack.c.bf16 %v209, %v208
  %v241 = vpack.c.bf16 %v219, %v218
  %v242 = vpack.c.bf16 %v229, %v228
  %v243 = vpack.c.bf16 %v239, %v238
  %245 = vrot.lane.b32.xlu0 %v200, 96
  %v246 = vpop.permute.xlu0 %245
  %v248 = vsel %vm80, %v240, 0
  %v251 = vsel %vm80, %v241, 0
  %v254 = vsel %vm80, %v242, 0
  %v257 = vsel %vm80, %v243, 0
  %v260 = vsel %vm80, %v246, 0
  %262 = vmatprep.subr.bf16.mxu0 0
  %263 = vmatpush1.bf16.xpose.msra.mxu0 %v260
  %264 = vmatprep.subr.bf16.mxu0 0
  %265 = vmatpush1.bf16.xpose.msra.mxu0 0
  %266 = vmatprep.subr.bf16.mxu0 0
  %267 = vmatpush1.bf16.xpose.msra.mxu0 0
  %268 = vmatprep.subr.bf16.mxu0 0
  %269 = vmatpush1.bf16.xpose.msra.mxu0 0
  %270 = vmatprep.subr.bf16.mxu0 0
  %271 = vmatpush1.bf16.xpose.msra.mxu0 0
  %272 = vmatprep.subr.bf16.mxu0 0
  %273 = vmatpush1.bf16.xpose.msra.mxu0 0
  %274 = vmatprep.subr.bf16.mxu0 0
  %275 = vmatpush1.bf16.xpose.msra.mxu0 0
  %276 = vmatprep.subr.bf16.mxu0 0
  %277 = vmatpush1.bf16.xpose.msra.mxu0 0
  %278 = vmatprep.subr.bf16.mxu0 0
  %279 = vmatpush1.bf16.xpose.msra.mxu0 0
  %280 = vmatprep.subr.bf16.mxu0 0
  %281 = vmatpush1.bf16.xpose.msra.mxu0 0
  %282 = vmatprep.subr.bf16.mxu0 0
  %283 = vmatpush1.bf16.xpose.msra.mxu0 0
  %284 = vmatprep.subr.bf16.mxu0 0
  %285 = vmatpush1.bf16.xpose.msra.mxu0 0
  %286 = vmatprep.subr.bf16.mxu0 0
  %287 = vmatpush1.bf16.xpose.msra.mxu0 0
  %288 = vmatprep.subr.bf16.mxu0 0
  %289 = vmatpush1.bf16.xpose.msra.mxu0 0
  %290 = vmatprep.subr.bf16.mxu0 0
  %291 = vmatpush1.bf16.xpose.msra.mxu0 0
  %292 = vmatprep.subr.bf16.mxu0 0
  %293 = vmatpush1.bf16.xpose.msra.mxu0 0
  %294 = vmatprep.mubr.bf16.mxu0 0
  %295 = vmatmul.mubr.bf16.gmra.mrb[0].mxu0 %v248
  %v296 = vpop.f32.mrb[0].mxu0
  %v297 = vadd.f32 0.0, %v296
  %v298 = vpop.f32.mrb[0].mxu0
  %v299 = vpop.f32.mrb[0].mxu0
  %v300 = vadd.f32 0.0, %v299
  %v301 = vpop.f32.mrb[0].mxu0
  %302 = vmatprep.mubr.bf16.mxu0 0
  %303 = vmatmul.mubr.bf16.gmra.mrb[0].mxu0 %v251
  %v304 = vpop.f32.mrb[0].mxu0
  %v305 = vadd.f32 0.0, %v304
  %v306 = vpop.f32.mrb[0].mxu0
  %v307 = vpop.f32.mrb[0].mxu0
  %v308 = vadd.f32 0.0, %v307
  %v309 = vpop.f32.mrb[0].mxu0
  %310 = vmatprep.mubr.bf16.mxu0 0
  %311 = vmatmul.mubr.bf16.gmra.mrb[0].mxu0 %v254
  %v312 = vpop.f32.mrb[0].mxu0
  %v313 = vadd.f32 0.0, %v312
  %v314 = vpop.f32.mrb[0].mxu0
  %v315 = vpop.f32.mrb[0].mxu0
  %v316 = vadd.f32 0.0, %v315
  %v317 = vpop.f32.mrb[0].mxu0
  %318 = vmatprep.mubr.bf16.mxu0 0
  %319 = vmatmul.mubr.bf16.gmra.mrb[0].mxu0 %v257
  %v320 = vpop.f32.mrb[0].mxu0
  %v321 = vadd.f32 0.0, %v320
  %v322 = vpop.f32.mrb[0].mxu0
  %v323 = vpop.f32.mrb[0].mxu0
  %v324 = vadd.f32 0.0, %v323
  %v325 = vpop.f32.mrb[0].mxu0
  %326 = vdwg.mxu0
  %v327 = vmul.f32 %v297, 0.35355338
  %v328 = vmul.f32 %v300, 0.35355338
  %v329 = vmul.f32 %v305, 0.35355338
  %v330 = vmul.f32 %v308, 0.35355338
  %v331 = vmul.f32 %v313, 0.35355338
  %v332 = vmul.f32 %v316, 0.35355338
  %v333 = vmul.f32 %v321, 0.35355338
  %v334 = vmul.f32 %v324, 0.35355338
  %v335 = vadd.f32 %v327, %v124
  %v336 = vadd.f32 %v328, %v125
  %v337 = vadd.f32 %v329, %v126
  %v338 = vadd.f32 %v330, %v127
  %v339 = vadd.f32 %v331, %v128
  %v340 = vadd.f32 %v332, %v129
  %v341 = vadd.f32 %v333, %v130
  %v342 = vadd.f32 %v334, %v131
  %vm343 = vcmask 130048
  %v344 = vsel %vm343, %v335, -inf
  %345 = vmax.xlane.f32.xlu0 %v344
  %v346 = vpop.xlane.xlu0 %345
  %v347 = vsel %vm343, %v336, -inf
  %348 = vmax.xlane.f32.xlu0 %v347
  %v349 = vpop.xlane.xlu0 %348
  %v350 = vsel %vm343, %v337, -inf
  %351 = vmax.xlane.f32.xlu0 %v350
  %v352 = vpop.xlane.xlu0 %351
  %v353 = vsel %vm343, %v338, -inf
  %354 = vmax.xlane.f32.xlu0 %v353
  %v355 = vpop.xlane.xlu0 %354
  %v356 = vsel %vm343, %v339, -inf
  %357 = vmax.xlane.f32.xlu0 %v356
  %v358 = vpop.xlane.xlu0 %357
  %v359 = vsel %vm343, %v340, -inf
  %360 = vmax.xlane.f32.xlu0 %v359
  %v361 = vpop.xlane.xlu0 %360
  %v362 = vsel %vm343, %v341, -inf
  %363 = vmax.xlane.f32.xlu0 %v362
  %v364 = vpop.xlane.xlu0 %363
  %v365 = vsel %vm343, %v342, -inf
  %366 = vmax.xlane.f32.xlu0 %v365
  %v367 = vpop.xlane.xlu0 %366
  %v368 = vsub.f32 %v335, %v346
  %v369 = vsub.f32 %v336, %v349
  %v370 = vsub.f32 %v337, %v352
  %v371 = vsub.f32 %v338, %v355
  %v372 = vsub.f32 %v339, %v358
  %v373 = vsub.f32 %v340, %v361
  %v374 = vsub.f32 %v341, %v364
  %v375 = vsub.f32 %v342, %v367
  %v376 = vmul.f32 %v368, 1.442695
  %v377 = vpow.pop %v376
  %v378 = vmul.f32 %v369, 1.442695
  %v379 = vpow.pop %v378
  %v380 = vmul.f32 %v370, 1.442695
  %v381 = vpow.pop %v380
  %v382 = vmul.f32 %v371, 1.442695
  %v383 = vpow.pop %v382
  %v384 = vmul.f32 %v372, 1.442695
  %v385 = vpow.pop %v384
  %v386 = vmul.f32 %v373, 1.442695
  %v387 = vpow.pop %v386
  %v388 = vmul.f32 %v374, 1.442695
  %v389 = vpow.pop %v388
  %v390 = vmul.f32 %v375, 1.442695
  %v391 = vpow.pop %v390
  %v392 = vsel %vm343, %v377, 0.0
  %393 = vadd.xlane.f32.xlu0 %v392
  %v394 = vpop.xlane.xlu0 %393
  %v395 = vsel %vm343, %v379, 0.0
  %396 = vadd.xlane.f32.xlu0 %v395
  %v397 = vpop.xlane.xlu0 %396
  %v398 = vsel %vm343, %v381, 0.0
  %399 = vadd.xlane.f32.xlu0 %v398
  %v400 = vpop.xlane.xlu0 %399
  %v401 = vsel %vm343, %v383, 0.0
  %402 = vadd.xlane.f32.xlu0 %v401
  %v403 = vpop.xlane.xlu0 %402
  %v404 = vsel %vm343, %v385, 0.0
  %405 = vadd.xlane.f32.xlu0 %v404
  %v406 = vpop.xlane.xlu0 %405
  %v407 = vsel %vm343, %v387, 0.0
  %408 = vadd.xlane.f32.xlu0 %v407
  %v409 = vpop.xlane.xlu0 %408
  %v410 = vsel %vm343, %v389, 0.0
  %411 = vadd.xlane.f32.xlu0 %v410
  %v412 = vpop.xlane.xlu0 %411
  %v413 = vsel %vm343, %v391, 0.0
  %414 = vadd.xlane.f32.xlu0 %v413
  %v415 = vpop.xlane.xlu0 %414
  %v416 = vrcp.pop %v394
  %v417 = vrcp.pop %v397
  %v418 = vrcp.pop %v400
  %v419 = vrcp.pop %v403
  %v420 = vrcp.pop %v406
  %v421 = vrcp.pop %v409
  %v422 = vrcp.pop %v412
  %v423 = vrcp.pop %v415
  %v424 = vmul.f32 %v377, %v416
  %v425 = vmul.f32 %v379, %v417
  %v426 = vmul.f32 %v381, %v418
  %v427 = vmul.f32 %v383, %v419
  %v428 = vmul.f32 %v385, %v420
  %v429 = vmul.f32 %v387, %v421
  %v430 = vmul.f32 %v389, %v422
  %v431 = vmul.f32 %v391, %v423
  %v432 = vpack.c.bf16 %v425, %v424
  %v433 = vpack.c.bf16 %v427, %v426
  %v434 = vpack.c.bf16 %v429, %v428
  %v435 = vpack.c.bf16 %v431, %v430
  %436 = vrot.lane.b32.xlu0 %v200, 64
  %v437 = vpop.permute.xlu0 %436
  %v440 = vsel %vm343, %v432, 0
  %v443 = vsel %vm343, %v433, 0
  %v446 = vsel %vm343, %v434, 0
  %v449 = vsel %vm343, %v435, 0
  %451 = vmatprep.subr.bf16.mxu0 0
  %452 = vmatpush1.bf16.msra.mxu0 %v437
  %453 = vmatprep.subr.bf16.mxu0 0
  %454 = vmatpush1.bf16.msra.mxu0 0
  %455 = vmatprep.subr.bf16.mxu0 0
  %456 = vmatpush1.bf16.msra.mxu0 0
  %457 = vmatprep.subr.bf16.mxu0 0
  %458 = vmatpush1.bf16.msra.mxu0 0
  %459 = vmatprep.subr.bf16.mxu0 0
  %460 = vmatpush1.bf16.msra.mxu0 0
  %461 = vmatprep.subr.bf16.mxu0 0
  %462 = vmatpush1.bf16.msra.mxu0 0
  %463 = vmatprep.subr.bf16.mxu0 0
  %464 = vmatpush1.bf16.msra.mxu0 0
  %465 = vmatprep.subr.bf16.mxu0 0
  %466 = vmatpush1.bf16.msra.mxu0 0
  %467 = vmatprep.subr.bf16.mxu0 0
  %468 = vmatpush1.bf16.msra.mxu0 0
  %469 = vmatprep.subr.bf16.mxu0 0
  %470 = vmatpush1.bf16.msra.mxu0 0
  %471 = vmatprep.subr.bf16.mxu0 0
  %472 = vmatpush1.bf16.msra.mxu0 0
  %473 = vmatprep.subr.bf16.mxu0 0
  %474 = vmatpush1.bf16.msra.mxu0 0
  %475 = vmatprep.subr.bf16.mxu0 0
  %476 = vmatpush1.bf16.msra.mxu0 0
  %477 = vmatprep.subr.bf16.mxu0 0
  %478 = vmatpush1.bf16.msra.mxu0 0
  %479 = vmatprep.subr.bf16.mxu0 0
  %480 = vmatpush1.bf16.msra.mxu0 0
  %481 = vmatprep.subr.bf16.mxu0 0
  %482 = vmatpush1.bf16.msra.mxu0 0
  %483 = vmatprep.mubr.bf16.mxu0 0
  %484 = vmatmul.mubr.bf16.gmra.mrb[0].mxu0 %v440
  %v485 = vpop.f32.mrb[0].mxu0
  %v486 = vadd.f32 0.0, %v485
  %v487 = vpop.f32.mrb[0].mxu0
  %v488 = vpop.f32.mrb[0].mxu0
  %v489 = vadd.f32 0.0, %v488
  %v490 = vpop.f32.mrb[0].mxu0
  %491 = vmatprep.mubr.bf16.mxu0 0
  %492 = vmatmul.mubr.bf16.gmra.mrb[0].mxu0 %v443
  %v493 = vpop.f32.mrb[0].mxu0
  %v494 = vadd.f32 0.0, %v493
  %v495 = vpop.f32.mrb[0].mxu0
  %v496 = vpop.f32.mrb[0].mxu0
  %v497 = vadd.f32 0.0, %v496
  %v498 = vpop.f32.mrb[0].mxu0
  %499 = vmatprep.mubr.bf16.mxu0 0
  %500 = vmatmul.mubr.bf16.gmra.mrb[0].mxu0 %v446
  %v501 = vpop.f32.mrb[0].mxu0
  %v502 = vadd.f32 0.0, %v501
  %v503 = vpop.f32.mrb[0].mxu0
  %v504 = vpop.f32.mrb[0].mxu0
  %v505 = vadd.f32 0.0, %v504
  %v506 = vpop.f32.mrb[0].mxu0
  %507 = vmatprep.mubr.bf16.mxu0 0
  %508 = vmatmul.mubr.bf16.gmra.mrb[0].mxu0 %v449
  %v509 = vpop.f32.mrb[0].mxu0
  %v510 = vadd.f32 0.0, %v509
  %v511 = vpop.f32.mrb[0].mxu0
  %v512 = vpop.f32.mrb[0].mxu0
  %v513 = vadd.f32 0.0, %v512
  %v514 = vpop.f32.mrb[0].mxu0
  %515 = vdwg.mxu0
  %v516 = vmul.f32 %v486, %v206
  %v517 = vmul.f32 %v489, %v206
  %v518 = vmul.f32 %v494, %v216
  %v519 = vmul.f32 %v497, %v216
  %v520 = vadd.f32 %v516, %v518
  %v521 = vadd.f32 %v517, %v519
  %v522 = vmul.f32 %v502, %v226
  %v523 = vmul.f32 %v505, %v226
  %v524 = vadd.f32 %v520, %v522
  %v525 = vadd.f32 %v521, %v523
  %v526 = vmul.f32 %v510, %v236
  %v527 = vmul.f32 %v513, %v236
  %v528 = vadd.f32 %v524, %v526
  %v529 = vadd.f32 %v525, %v527
  %v530 = vpack.c.bf16 %v529, %v528
  %v531 = vld [vmem:[%s9] sm:$0xf]
  %v532 = vld [vmem:[%s9 + $0x4] sm:$0xf]
  %v533 = vld [vmem:[%s9 + $0x8] sm:$0xf]
  %v534 = vld [vmem:[%s9 + $0xc] sm:$0xf]
  %v535 = vld [vmem:[%s10] sm:$0x1]
  %v537 = vlaneseq
  %v538 = vshrl.u32 %v537, 7
  %v539 = vsub.s32 0, %v538
  %v540 = vrot.slane %v535, %v539
  %v546 = vunpack.c.l.b16 %v531
  %v547 = vunpack.c.l.b16 %v532
  %v548 = vunpack.c.l.b16 %v533
  %v549 = vunpack.c.l.b16 %v534
  %v550 = vpack.c.b16 %v547, %v546
  %v551 = vpack.c.b16 %v549, %v548
  %v555 = vsel %vm80, %v530, 0
  %557 = vmatprep.subr.bf16.mxu0 0
  %558 = vmatpush1.bf16.msra.mxu0 %v550
  %559 = vmatprep.subr.bf16.mxu0 0
  %560 = vmatpush1.bf16.msra.mxu0 %v551
  %561 = vmatprep.subr.bf16.mxu0 0
  %562 = vmatpush1.bf16.msra.mxu0 0
  %563 = vmatprep.subr.bf16.mxu0 0
  %564 = vmatpush1.bf16.msra.mxu0 0
  %565 = vmatprep.subr.bf16.mxu0 0
  %566 = vmatpush1.bf16.msra.mxu0 0
  %567 = vmatprep.subr.bf16.mxu0 0
  %568 = vmatpush1.bf16.msra.mxu0 0
  %569 = vmatprep.subr.bf16.mxu0 0
  %570 = vmatpush1.bf16.msra.mxu0 0
  %571 = vmatprep.subr.bf16.mxu0 0
  %572 = vmatpush1.bf16.msra.mxu0 0
  %573 = vmatprep.subr.bf16.mxu0 0
  %574 = vmatpush1.bf16.msra.mxu0 0
  %575 = vmatprep.subr.bf16.mxu0 0
  %576 = vmatpush1.bf16.msra.mxu0 0
  %577 = vmatprep.subr.bf16.mxu0 0
  %578 = vmatpush1.bf16.msra.mxu0 0
  %579 = vmatprep.subr.bf16.mxu0 0
  %580 = vmatpush1.bf16.msra.mxu0 0
  %581 = vmatprep.subr.bf16.mxu0 0
  %582 = vmatpush1.bf16.msra.mxu0 0
  %583 = vmatprep.subr.bf16.mxu0 0
  %584 = vmatpush1.bf16.msra.mxu0 0
  %585 = vmatprep.subr.bf16.mxu0 0
  %586 = vmatpush1.bf16.msra.mxu0 0
  %587 = vmatprep.subr.bf16.mxu0 0
  %588 = vmatpush1.bf16.msra.mxu0 0
  %589 = vmatprep.mubr.bf16.mxu0 0
  %590 = vmatmul.mubr.bf16.gmra.mrb[0].mxu0 %v555
  %v591 = vpop.f32.mrb[0].mxu0
  %v592 = vadd.f32 %v540, %v591
  %v593 = vpop.f32.mrb[0].mxu0
  %v594 = vpop.f32.mrb[0].mxu0
  %v595 = vadd.f32 %v540, %v594
  %v596 = vpop.f32.mrb[0].mxu0
  %597 = vdwg.mxu0
  %v598 = vadd.f32 %v592, %v122
  %v599 = vadd.f32 %v595, %v123
  %v600 = vld [vmem:[%s11] sm:$0x1]
  %v601 = vld [vmem:[%s12] sm:$0x1]
  %v602 = vsel %vm80, %v598, 0.0
  %603 = vadd.xlane.f32.xlu0 %v602
  %v604 = vpop.xlane.xlu0 %603
  %v605 = vsel %vm80, %v599, 0.0
  %606 = vadd.xlane.f32.xlu0 %v605
  %v607 = vpop.xlane.xlu0 %606
  %v608 = vmul.f32 %v604, %v87
  %v609 = vmul.f32 %v607, %v87
  %v610 = vsub.f32 %v598, %v608
  %v611 = vsub.f32 %v599, %v609
  %v612 = vmul.f32 %v610, %v610
  %v613 = vmul.f32 %v611, %v611
  %v614 = vsel %vm80, %v612, 0.0
  %615 = vadd.xlane.f32.xlu0 %v614
  %v616 = vpop.xlane.xlu0 %615
  %v617 = vsel %vm80, %v613, 0.0
  %618 = vadd.xlane.f32.xlu0 %v617
  %v619 = vpop.xlane.xlu0 %618
  %v620 = vmul.f32 %v616, %v87
  %v621 = vmul.f32 %v619, %v87
  %v622 = vadd.f32 %v620, 1e-12
  %v623 = vadd.f32 %v621, 1e-12
  %v624 = vrsqrt.pop %v622
  %v625 = vrsqrt.pop %v623
  %v626 = vmul.f32 %v610, %v624
  %v627 = vmul.f32 %v611, %v625
  %v629 = vlaneseq
  %v630 = vshrl.u32 %v629, 7
  %v631 = vsub.s32 0, %v630
  %v632 = vrot.slane %v600, %v631
  %v634 = vmul.f32 %v632, %v626
  %v635 = vmul.f32 %v632, %v627
  %v637 = vlaneseq
  %v638 = vshrl.u32 %v637, 7
  %v639 = vsub.s32 0, %v638
  %v640 = vrot.slane %v601, %v639
  %v642 = vadd.f32 %v634, %v640
  %v643 = vadd.f32 %v635, %v640
  %v644 = vpack.c.bf16 %v643, %v642
  %v645 = vld [vmem:[%s13] sm:$0xf]
  %v646 = vld [vmem:[%s13 + $0x4] sm:$0xf]
  %v647 = vld [vmem:[%s13 + $0x8] sm:$0xf]
  %v648 = vld [vmem:[%s13 + $0xc] sm:$0xf]
  %v649 = vld [vmem:[%s14] sm:$0x1]
  %v651 = vlaneseq
  %v652 = vshrl.u32 %v651, 7
  %v653 = vsub.s32 0, %v652
  %v654 = vrot.slane %v649, %v653
  %v660 = vunpack.c.l.b16 %v645
  %v661 = vunpack.c.l.b16 %v646
  %v662 = vunpack.c.l.b16 %v647
  %v663 = vunpack.c.l.b16 %v648
  %v664 = vpack.c.b16 %v661, %v660
  %v665 = vpack.c.b16 %v663, %v662
  %v669 = vsel %vm80, %v644, 0
  %671 = vmatprep.subr.bf16.mxu0 0
  %672 = vmatpush1.bf16.msra.mxu0 %v664
  %673 = vmatprep.subr.bf16.mxu0 0
  %674 = vmatpush1.bf16.msra.mxu0 %v665
  %675 = vmatprep.subr.bf16.mxu0 0
  %676 = vmatpush1.bf16.msra.mxu0 0
  %677 = vmatprep.subr.bf16.mxu0 0
  %678 = vmatpush1.bf16.msra.mxu0 0
  %679 = vmatprep.subr.bf16.mxu0 0
  %680 = vmatpush1.bf16.msra.mxu0 0
  %681 = vmatprep.subr.bf16.mxu0 0
  %682 = vmatpush1.bf16.msra.mxu0 0
  %683 = vmatprep.subr.bf16.mxu0 0
  %684 = vmatpush1.bf16.msra.mxu0 0
  %685 = vmatprep.subr.bf16.mxu0 0
  %686 = vmatpush1.bf16.msra.mxu0 0
  %687 = vmatprep.subr.bf16.mxu0 0
  %688 = vmatpush1.bf16.msra.mxu0 0
  %689 = vmatprep.subr.bf16.mxu0 0
  %690 = vmatpush1.bf16.msra.mxu0 0
  %691 = vmatprep.subr.bf16.mxu0 0
  %692 = vmatpush1.bf16.msra.mxu0 0
  %693 = vmatprep.subr.bf16.mxu0 0
  %694 = vmatpush1.bf16.msra.mxu0 0
  %695 = vmatprep.subr.bf16.mxu0 0
  %696 = vmatpush1.bf16.msra.mxu0 0
  %697 = vmatprep.subr.bf16.mxu0 0
  %698 = vmatpush1.bf16.msra.mxu0 0
  %699 = vmatprep.subr.bf16.mxu0 0
  %700 = vmatpush1.bf16.msra.mxu0 0
  %701 = vmatprep.subr.bf16.mxu0 0
  %702 = vmatpush1.bf16.msra.mxu0 0
  %703 = vmatprep.mubr.bf16.mxu0 0
  %704 = vmatmul.mubr.bf16.gmra.mrb[0].mxu0 %v669
  %v705 = vpop.f32.mrb[0].mxu0
  %v706 = vadd.f32 %v654, %v705
  %v707 = vpop.f32.mrb[0].mxu0
  %v708 = vpop.f32.mrb[0].mxu0
  %v709 = vadd.f32 %v654, %v708
  %v710 = vpop.f32.mrb[0].mxu0
  %711 = vdwg.mxu0
  %v712 = vmul.f32 %v706, 0.5
  %v713 = vmul.f32 %v709, 0.5
  %v714 = vmul.f32 %v706, 0.70710677
  %v715 = vmul.f32 %v709, 0.70710677
  %v716 = vand.u32 2147483647, %v714
  %v717 = vand.u32 2147483647, %v715
  %v718 = vmul.f32 %v716, 0.3275911
  %v719 = vmul.f32 %v717, 0.3275911
  %v720 = vadd.f32 %v718, 1.0
  %v721 = vadd.f32 %v719, 1.0
  %v722 = vrcp.pop %v720
  %v723 = vmul.f32 1.0, %v722
  %v724 = vrcp.pop %v721
  %v725 = vmul.f32 1.0, %v724
  %v726 = vmul.f32 %v723, 1.0614054
  %v727 = vmul.f32 %v725, 1.0614054
  %v728 = vadd.f32 %v726, -1.4531521
  %v729 = vadd.f32 %v727, -1.4531521
  %v730 = vmul.f32 %v728, %v723
  %v731 = vmul.f32 %v729, %v725
  %v732 = vadd.f32 %v730, 1.4214138
  %v733 = vadd.f32 %v731, 1.4214138
  %v734 = vmul.f32 %v732, %v723
  %v735 = vmul.f32 %v733, %v725
  %v736 = vadd.f32 %v734, -0.28449672
  %v737 = vadd.f32 %v735, -0.28449672
  %v738 = vmul.f32 %v736, %v723
  %v739 = vmul.f32 %v737, %v725
  %v740 = vadd.f32 %v738, 0.2548296
  %v741 = vadd.f32 %v739, 0.2548296
  %v742 = vmul.f32 %v740, %v723
  %v743 = vmul.f32 %v741, %v725
  %v744 = vsub.f32 0.0, %v716
  %v745 = vsub.f32 0.0, %v717
  %v746 = vmul.f32 %v744, %v716
  %v747 = vmul.f32 %v745, %v717
  %v748 = vmul.f32 %v746, 1.442695
  %v749 = vpow.pop %v748
  %v750 = vmul.f32 %v747, 1.442695
  %v751 = vpow.pop %v750
  %v752 = vmul.f32 %v742, %v749
  %v753 = vmul.f32 %v743, %v751
  %v754 = vsub.f32 1.0, %v752
  %v755 = vsub.f32 1.0, %v753
  %vm756 = vcmp.ge.f32.partialorder %v714, 0.0
  %vm757 = vcmp.ge.f32.partialorder %v715, 0.0
  %v758 = vsub.f32 0.0, %v754
  %v759 = vsub.f32 0.0, %v755
  %v760 = vsel %vm756, %v754, %v758
  %v761 = vsel %vm757, %v755, %v759
  %v762 = vadd.f32 %v760, 1.0
  %v763 = vadd.f32 %v761, 1.0
  %v764 = vmul.f32 %v712, %v762
  %v765 = vmul.f32 %v713, %v763
  %v766 = vpack.c.bf16 %v765, %v764
  %v767 = vld [vmem:[%s15] sm:$0xf]
  %v768 = vld [vmem:[%s15 + $0x4] sm:$0xf]
  %v769 = vld [vmem:[%s15 + $0x8] sm:$0xf]
  %v770 = vld [vmem:[%s15 + $0xc] sm:$0xf]
  %v771 = vld [vmem:[%s15 + $0x10] sm:$0xf]
  %v772 = vld [vmem:[%s15 + $0x14] sm:$0xf]
  %v773 = vld [vmem:[%s15 + $0x18] sm:$0xf]
  %v774 = vld [vmem:[%s15 + $0x1c] sm:$0xf]
  %v775 = vld [vmem:[%s16] sm:$0x1]
  %v777 = vlaneseq
  %v778 = vshrl.u32 %v777, 7
  %v779 = vsub.s32 0, %v778
  %v780 = vrot.slane %v775, %v779
  %v790 = vunpack.c.l.b16 %v767
  %v791 = vunpack.c.l.b16 %v768
  %v792 = vunpack.c.l.b16 %v769
  %v793 = vunpack.c.l.b16 %v770
  %v794 = vunpack.c.l.b16 %v771
  %v795 = vunpack.c.l.b16 %v772
  %v796 = vunpack.c.l.b16 %v773
  %v797 = vunpack.c.l.b16 %v774
  %v798 = vpack.c.b16 %v791, %v790
  %v799 = vpack.c.b16 %v793, %v792
  %v800 = vpack.c.b16 %v795, %v794
  %v801 = vpack.c.b16 %v797, %v796
  %vm806 = vcmask 523264
  %v808 = vsel %vm806, %v766, 0
  %810 = vmatprep.subr.bf16.mxu0 0
  %811 = vmatpush1.bf16.msra.mxu0 %v798
  %812 = vmatprep.subr.bf16.mxu0 0
  %813 = vmatpush1.bf16.msra.mxu0 %v799
  %814 = vmatprep.subr.bf16.mxu0 0
  %815 = vmatpush1.bf16.msra.mxu0 %v800
  %816 = vmatprep.subr.bf16.mxu0 0
  %817 = vmatpush1.bf16.msra.mxu0 %v801
  %818 = vmatprep.subr.bf16.mxu0 0
  %819 = vmatpush1.bf16.msra.mxu0 0
  %820 = vmatprep.subr.bf16.mxu0 0
  %821 = vmatpush1.bf16.msra.mxu0 0
  %822 = vmatprep.subr.bf16.mxu0 0
  %823 = vmatpush1.bf16.msra.mxu0 0
  %824 = vmatprep.subr.bf16.mxu0 0
  %825 = vmatpush1.bf16.msra.mxu0 0
  %826 = vmatprep.subr.bf16.mxu0 0
  %827 = vmatpush1.bf16.msra.mxu0 0
  %828 = vmatprep.subr.bf16.mxu0 0
  %829 = vmatpush1.bf16.msra.mxu0 0
  %830 = vmatprep.subr.bf16.mxu0 0
  %831 = vmatpush1.bf16.msra.mxu0 0
  %832 = vmatprep.subr.bf16.mxu0 0
  %833 = vmatpush1.bf16.msra.mxu0 0
  %834 = vmatprep.subr.bf16.mxu0 0
  %835 = vmatpush1.bf16.msra.mxu0 0
  %836 = vmatprep.subr.bf16.mxu0 0
  %837 = vmatpush1.bf16.msra.mxu0 0
  %838 = vmatprep.subr.bf16.mxu0 0
  %839 = vmatpush1.bf16.msra.mxu0 0
  %840 = vmatprep.subr.bf16.mxu0 0
  %841 = vmatpush1.bf16.msra.mxu0 0
  %842 = vmatprep.mubr.bf16.mxu0 0
  %843 = vmatmul.mubr.bf16.gmra.mrb[0].mxu0 %v808
  %v844 = vpop.f32.mrb[0].mxu0
  %v845 = vadd.f32 %v780, %v844
  %v846 = vpop.f32.mrb[0].mxu0
  %v847 = vpop.f32.mrb[0].mxu0
  %v848 = vadd.f32 %v780, %v847
  %v849 = vpop.f32.mrb[0].mxu0
  %850 = vdwg.mxu0
  %v851 = vadd.f32 %v845, %v642
  %v852 = vadd.f32 %v848, %v643
  %v853 = vld [vmem:[%s17] sm:$0x1]
  %v854 = vld [vmem:[%s18] sm:$0x1]
  %v855 = vsel %vm80, %v851, 0.0
  %856 = vadd.xlane.f32.xlu0 %v855
  %v857 = vpop.xlane.xlu0 %856
  %v858 = vsel %vm80, %v852, 0.0
  %859 = vadd.xlane.f32.xlu0 %v858
  %v860 = vpop.xlane.xlu0 %859
  %v861 = vmul.f32 %v857, %v87
  %v862 = vmul.f32 %v860, %v87
  %v863 = vsub.f32 %v851, %v861
  %v864 = vsub.f32 %v852, %v862
  %v865 = vmul.f32 %v863, %v863
  %v866 = vmul.f32 %v864, %v864
  %v867 = vsel %vm80, %v865, 0.0
  %868 = vadd.xlane.f32.xlu0 %v867
  %v869 = vpop.xlane.xlu0 %868
  %v870 = vsel %vm80, %v866, 0.0
  %871 = vadd.xlane.f32.xlu0 %v870
  %v872 = vpop.xlane.xlu0 %871
  %v873 = vmul.f32 %v869, %v87
  %v874 = vmul.f32 %v872, %v87
  %v875 = vadd.f32 %v873, 1e-12
  %v876 = vadd.f32 %v874, 1e-12
  %v877 = vrsqrt.pop %v875
  %v878 = vrsqrt.pop %v876
  %v879 = vmul.f32 %v863, %v877
  %v880 = vmul.f32 %v864, %v878
  %v882 = vlaneseq
  %v883 = vshrl.u32 %v882, 7
  %v884 = vsub.s32 0, %v883
  %v885 = vrot.slane %v853, %v884
  %v887 = vmul.f32 %v885, %v879
  %v888 = vmul.f32 %v885, %v880
  %v890 = vlaneseq
  %v891 = vshrl.u32 %v890, 7
  %v892 = vsub.s32 0, %v891
  %v893 = vrot.slane %v854, %v892
  %v895 = vadd.f32 %v887, %v893
  %v896 = vadd.f32 %v888, %v893
  %v897 = vpack.c.bf16 %v896, %v895
  %s898 = scalar_lea.vmem %s7, 16
  %v899 = vld [vmem:[%s898] sm:$0xf]
  %v900 = vld [vmem:[%s898 + $0x4] sm:$0xf]
  %v901 = vld [vmem:[%s898 + $0x8] sm:$0xf]
  %v902 = vld [vmem:[%s898 + $0xc] sm:$0xf]
  %s903 = scalar_lea.vmem %s8, 1
  %v904 = vld [vmem:[%s903] sm:$0x1]
  %v906 = vlaneseq
  %v907 = vshrl.u32 %v906, 7
  %v908 = vsub.s32 0, %v907
  %v909 = vrot.slane %v904, %v908
  %v915 = vunpack.c.l.b16 %v899
  %v916 = vunpack.c.l.b16 %v900
  %v917 = vunpack.c.l.b16 %v901
  %v918 = vunpack.c.l.b16 %v902
  %v919 = vpack.c.b16 %v916, %v915
  %v920 = vpack.c.b16 %v918, %v917
  %v924 = vsel %vm80, %v897, 0
  %926 = vmatprep.subr.bf16.mxu0 0
  %927 = vmatpush1.bf16.msra.mxu0 %v919
  %928 = vmatprep.subr.bf16.mxu0 0
  %929 = vmatpush1.bf16.msra.mxu0 %v920
  %930 = vmatprep.subr.bf16.mxu0 0
  %931 = vmatpush1.bf16.msra.mxu0 0
  %932 = vmatprep.subr.bf16.mxu0 0
  %933 = vmatpush1.bf16.msra.mxu0 0
  %934 = vmatprep.subr.bf16.mxu0 0
  %935 = vmatpush1.bf16.msra.mxu0 0
  %936 = vmatprep.subr.bf16.mxu0 0
  %937 = vmatpush1.bf16.msra.mxu0 0
  %938 = vmatprep.subr.bf16.mxu0 0
  %939 = vmatpush1.bf16.msra.mxu0 0
  %940 = vmatprep.subr.bf16.mxu0 0
  %941 = vmatpush1.bf16.msra.mxu0 0
  %942 = vmatprep.subr.bf16.mxu0 0
  %943 = vmatpush1.bf16.msra.mxu0 0
  %944 = vmatprep.subr.bf16.mxu0 0
  %945 = vmatpush1.bf16.msra.mxu0 0
  %946 = vmatprep.subr.bf16.mxu0 0
  %947 = vmatpush1.bf16.msra.mxu0 0
  %948 = vmatprep.subr.bf16.mxu0 0
  %949 = vmatpush1.bf16.msra.mxu0 0
  %950 = vmatprep.subr.bf16.mxu0 0
  %951 = vmatpush1.bf16.msra.mxu0 0
  %952 = vmatprep.subr.bf16.mxu0 0
  %953 = vmatpush1.bf16.msra.mxu0 0
  %954 = vmatprep.subr.bf16.mxu0 0
  %955 = vmatpush1.bf16.msra.mxu0 0
  %956 = vmatprep.subr.bf16.mxu0 0
  %957 = vmatpush1.bf16.msra.mxu0 0
  %958 = vmatprep.mubr.bf16.mxu0 0
  %959 = vmatmul.mubr.bf16.gmra.mrb[0].mxu0 %v924
  %v960 = vpop.f32.mrb[0].mxu0
  %v961 = vadd.f32 %v909, %v960
  %v962 = vpop.f32.mrb[0].mxu0
  %v963 = vpop.f32.mrb[0].mxu0
  %v964 = vadd.f32 %v909, %v963
  %v965 = vpop.f32.mrb[0].mxu0
  %966 = vdwg.mxu0
  %v967 = vpack.c.bf16 %v964, %v961
  %v968 = vmul.f32 %v961, %v206
  %v969 = vmul.f32 %v964, %v206
  %v970 = vmul.f32 %v961, %v216
  %v971 = vmul.f32 %v964, %v216
  %v972 = vmul.f32 %v961, %v226
  %v973 = vmul.f32 %v964, %v226
  %v974 = vmul.f32 %v961, %v236
  %v975 = vmul.f32 %v964, %v236
  %v976 = vpack.c.bf16 %v969, %v968
  %v977 = vpack.c.bf16 %v971, %v970
  %v978 = vpack.c.bf16 %v973, %v972
  %v979 = vpack.c.bf16 %v975, %v974
  %981 = vrot.lane.b32.xlu0 %v967, 96
  %v982 = vpop.permute.xlu0 %981
  %v984 = vsel %vm80, %v976, 0
  %v987 = vsel %vm80, %v977, 0
  %v990 = vsel %vm80, %v978, 0
  %v993 = vsel %vm80, %v979, 0
  %v996 = vsel %vm80, %v982, 0
  %998 = vmatprep.subr.bf16.mxu0 0
  %999 = vmatpush1.bf16.xpose.msra.mxu0 %v996
  %1000 = vmatprep.subr.bf16.mxu0 0
  %1001 = vmatpush1.bf16.xpose.msra.mxu0 0
  %1002 = vmatprep.subr.bf16.mxu0 0
  %1003 = vmatpush1.bf16.xpose.msra.mxu0 0
  %1004 = vmatprep.subr.bf16.mxu0 0
  %1005 = vmatpush1.bf16.xpose.msra.mxu0 0
  %1006 = vmatprep.subr.bf16.mxu0 0
  %1007 = vmatpush1.bf16.xpose.msra.mxu0 0
  %1008 = vmatprep.subr.bf16.mxu0 0
  %1009 = vmatpush1.bf16.xpose.msra.mxu0 0
  %1010 = vmatprep.subr.bf16.mxu0 0
  %1011 = vmatpush1.bf16.xpose.msra.mxu0 0
  %1012 = vmatprep.subr.bf16.mxu0 0
  %1013 = vmatpush1.bf16.xpose.msra.mxu0 0
  %1014 = vmatprep.subr.bf16.mxu0 0
  %1015 = vmatpush1.bf16.xpose.msra.mxu0 0
  %1016 = vmatprep.subr.bf16.mxu0 0
  %1017 = vmatpush1.bf16.xpose.msra.mxu0 0
  %1018 = vmatprep.subr.bf16.mxu0 0
  %1019 = vmatpush1.bf16.xpose.msra.mxu0 0
  %1020 = vmatprep.subr.bf16.mxu0 0
  %1021 = vmatpush1.bf16.xpose.msra.mxu0 0
  %1022 = vmatprep.subr.bf16.mxu0 0
  %1023 = vmatpush1.bf16.xpose.msra.mxu0 0
  %1024 = vmatprep.subr.bf16.mxu0 0
  %1025 = vmatpush1.bf16.xpose.msra.mxu0 0
  %1026 = vmatprep.subr.bf16.mxu0 0
  %1027 = vmatpush1.bf16.xpose.msra.mxu0 0
  %1028 = vmatprep.subr.bf16.mxu0 0
  %1029 = vmatpush1.bf16.xpose.msra.mxu0 0
  %1030 = vmatprep.mubr.bf16.mxu0 0
  %1031 = vmatmul.mubr.bf16.gmra.mrb[0].mxu0 %v984
  %v1032 = vpop.f32.mrb[0].mxu0
  %v1033 = vadd.f32 0.0, %v1032
  %v1034 = vpop.f32.mrb[0].mxu0
  %v1035 = vpop.f32.mrb[0].mxu0
  %v1036 = vadd.f32 0.0, %v1035
  %v1037 = vpop.f32.mrb[0].mxu0
  %1038 = vmatprep.mubr.bf16.mxu0 0
  %1039 = vmatmul.mubr.bf16.gmra.mrb[0].mxu0 %v987
  %v1040 = vpop.f32.mrb[0].mxu0
  %v1041 = vadd.f32 0.0, %v1040
  %v1042 = vpop.f32.mrb[0].mxu0
  %v1043 = vpop.f32.mrb[0].mxu0
  %v1044 = vadd.f32 0.0, %v1043
  %v1045 = vpop.f32.mrb[0].mxu0
  %1046 = vmatprep.mubr.bf16.mxu0 0
  %1047 = vmatmul.mubr.bf16.gmra.mrb[0].mxu0 %v990
  %v1048 = vpop.f32.mrb[0].mxu0
  %v1049 = vadd.f32 0.0, %v1048
  %v1050 = vpop.f32.mrb[0].mxu0
  %v1051 = vpop.f32.mrb[0].mxu0
  %v1052 = vadd.f32 0.0, %v1051
  %v1053 = vpop.f32.mrb[0].mxu0
  %1054 = vmatprep.mubr.bf16.mxu0 0
  %1055 = vmatmul.mubr.bf16.gmra.mrb[0].mxu0 %v993
  %v1056 = vpop.f32.mrb[0].mxu0
  %v1057 = vadd.f32 0.0, %v1056
  %v1058 = vpop.f32.mrb[0].mxu0
  %v1059 = vpop.f32.mrb[0].mxu0
  %v1060 = vadd.f32 0.0, %v1059
  %v1061 = vpop.f32.mrb[0].mxu0
  %1062 = vdwg.mxu0
  %v1063 = vmul.f32 %v1033, 0.35355338
  %v1064 = vmul.f32 %v1036, 0.35355338
  %v1065 = vmul.f32 %v1041, 0.35355338
  %v1066 = vmul.f32 %v1044, 0.35355338
  %v1067 = vmul.f32 %v1049, 0.35355338
  %v1068 = vmul.f32 %v1052, 0.35355338
  %v1069 = vmul.f32 %v1057, 0.35355338
  %v1070 = vmul.f32 %v1060, 0.35355338
  %v1071 = vadd.f32 %v1063, %v124
  %v1072 = vadd.f32 %v1064, %v125
  %v1073 = vadd.f32 %v1065, %v126
  %v1074 = vadd.f32 %v1066, %v127
  %v1075 = vadd.f32 %v1067, %v128
  %v1076 = vadd.f32 %v1068, %v129
  %v1077 = vadd.f32 %v1069, %v130
  %v1078 = vadd.f32 %v1070, %v131
  %v1079 = vsel %vm343, %v1071, -inf
  %1080 = vmax.xlane.f32.xlu0 %v1079
  %v1081 = vpop.xlane.xlu0 %1080
  %v1082 = vsel %vm343, %v1072, -inf
  %1083 = vmax.xlane.f32.xlu0 %v1082
  %v1084 = vpop.xlane.xlu0 %1083
  %v1085 = vsel %vm343, %v1073, -inf
  %1086 = vmax.xlane.f32.xlu0 %v1085
  %v1087 = vpop.xlane.xlu0 %1086
  %v1088 = vsel %vm343, %v1074, -inf
  %1089 = vmax.xlane.f32.xlu0 %v1088
  %v1090 = vpop.xlane.xlu0 %1089
  %v1091 = vsel %vm343, %v1075, -inf
  %1092 = vmax.xlane.f32.xlu0 %v1091
  %v1093 = vpop.xlane.xlu0 %1092
  %v1094 = vsel %vm343, %v1076, -inf
  %1095 = vmax.xlane.f32.xlu0 %v1094
  %v1096 = vpop.xlane.xlu0 %1095
  %v1097 = vsel %vm343, %v1077, -inf
  %1098 = vmax.xlane.f32.xlu0 %v1097
  %v1099 = vpop.xlane.xlu0 %1098
  %v1100 = vsel %vm343, %v1078, -inf
  %1101 = vmax.xlane.f32.xlu0 %v1100
  %v1102 = vpop.xlane.xlu0 %1101
  %v1103 = vsub.f32 %v1071, %v1081
  %v1104 = vsub.f32 %v1072, %v1084
  %v1105 = vsub.f32 %v1073, %v1087
  %v1106 = vsub.f32 %v1074, %v1090
  %v1107 = vsub.f32 %v1075, %v1093
  %v1108 = vsub.f32 %v1076, %v1096
  %v1109 = vsub.f32 %v1077, %v1099
  %v1110 = vsub.f32 %v1078, %v1102
  %v1111 = vmul.f32 %v1103, 1.442695
  %v1112 = vpow.pop %v1111
  %v1113 = vmul.f32 %v1104, 1.442695
  %v1114 = vpow.pop %v1113
  %v1115 = vmul.f32 %v1105, 1.442695
  %v1116 = vpow.pop %v1115
  %v1117 = vmul.f32 %v1106, 1.442695
  %v1118 = vpow.pop %v1117
  %v1119 = vmul.f32 %v1107, 1.442695
  %v1120 = vpow.pop %v1119
  %v1121 = vmul.f32 %v1108, 1.442695
  %v1122 = vpow.pop %v1121
  %v1123 = vmul.f32 %v1109, 1.442695
  %v1124 = vpow.pop %v1123
  %v1125 = vmul.f32 %v1110, 1.442695
  %v1126 = vpow.pop %v1125
  %v1127 = vsel %vm343, %v1112, 0.0
  %1128 = vadd.xlane.f32.xlu0 %v1127
  %v1129 = vpop.xlane.xlu0 %1128
  %v1130 = vsel %vm343, %v1114, 0.0
  %1131 = vadd.xlane.f32.xlu0 %v1130
  %v1132 = vpop.xlane.xlu0 %1131
  %v1133 = vsel %vm343, %v1116, 0.0
  %1134 = vadd.xlane.f32.xlu0 %v1133
  %v1135 = vpop.xlane.xlu0 %1134
  %v1136 = vsel %vm343, %v1118, 0.0
  %1137 = vadd.xlane.f32.xlu0 %v1136
  %v1138 = vpop.xlane.xlu0 %1137
  %v1139 = vsel %vm343, %v1120, 0.0
  %1140 = vadd.xlane.f32.xlu0 %v1139
  %v1141 = vpop.xlane.xlu0 %1140
  %v1142 = vsel %vm343, %v1122, 0.0
  %1143 = vadd.xlane.f32.xlu0 %v1142
  %v1144 = vpop.xlane.xlu0 %1143
  %v1145 = vsel %vm343, %v1124, 0.0
  %1146 = vadd.xlane.f32.xlu0 %v1145
  %v1147 = vpop.xlane.xlu0 %1146
  %v1148 = vsel %vm343, %v1126, 0.0
  %1149 = vadd.xlane.f32.xlu0 %v1148
  %v1150 = vpop.xlane.xlu0 %1149
  %v1151 = vrcp.pop %v1129
  %v1152 = vrcp.pop %v1132
  %v1153 = vrcp.pop %v1135
  %v1154 = vrcp.pop %v1138
  %v1155 = vrcp.pop %v1141
  %v1156 = vrcp.pop %v1144
  %v1157 = vrcp.pop %v1147
  %v1158 = vrcp.pop %v1150
  %v1159 = vmul.f32 %v1112, %v1151
  %v1160 = vmul.f32 %v1114, %v1152
  %v1161 = vmul.f32 %v1116, %v1153
  %v1162 = vmul.f32 %v1118, %v1154
  %v1163 = vmul.f32 %v1120, %v1155
  %v1164 = vmul.f32 %v1122, %v1156
  %v1165 = vmul.f32 %v1124, %v1157
  %v1166 = vmul.f32 %v1126, %v1158
  %v1167 = vpack.c.bf16 %v1160, %v1159
  %v1168 = vpack.c.bf16 %v1162, %v1161
  %v1169 = vpack.c.bf16 %v1164, %v1163
  %v1170 = vpack.c.bf16 %v1166, %v1165
  %1171 = vrot.lane.b32.xlu0 %v967, 64
  %v1172 = vpop.permute.xlu0 %1171
  %v1175 = vsel %vm343, %v1167, 0
  %v1178 = vsel %vm343, %v1168, 0
  %v1181 = vsel %vm343, %v1169, 0
  %v1184 = vsel %vm343, %v1170, 0
  %1186 = vmatprep.subr.bf16.mxu0 0
  %1187 = vmatpush1.bf16.msra.mxu0 %v1172
  %1188 = vmatprep.subr.bf16.mxu0 0
  %1189 = vmatpush1.bf16.msra.mxu0 0
  %1190 = vmatprep.subr.bf16.mxu0 0
  %1191 = vmatpush1.bf16.msra.mxu0 0
  %1192 = vmatprep.subr.bf16.mxu0 0
  %1193 = vmatpush1.bf16.msra.mxu0 0
  %1194 = vmatprep.subr.bf16.mxu0 0
  %1195 = vmatpush1.bf16.msra.mxu0 0
  %1196 = vmatprep.subr.bf16.mxu0 0
  %1197 = vmatpush1.bf16.msra.mxu0 0
  %1198 = vmatprep.subr.bf16.mxu0 0
  %1199 = vmatpush1.bf16.msra.mxu0 0
  %1200 = vmatprep.subr.bf16.mxu0 0
  %1201 = vmatpush1.bf16.msra.mxu0 0
  %1202 = vmatprep.subr.bf16.mxu0 0
  %1203 = vmatpush1.bf16.msra.mxu0 0
  %1204 = vmatprep.subr.bf16.mxu0 0
  %1205 = vmatpush1.bf16.msra.mxu0 0
  %1206 = vmatprep.subr.bf16.mxu0 0
  %1207 = vmatpush1.bf16.msra.mxu0 0
  %1208 = vmatprep.subr.bf16.mxu0 0
  %1209 = vmatpush1.bf16.msra.mxu0 0
  %1210 = vmatprep.subr.bf16.mxu0 0
  %1211 = vmatpush1.bf16.msra.mxu0 0
  %1212 = vmatprep.subr.bf16.mxu0 0
  %1213 = vmatpush1.bf16.msra.mxu0 0
  %1214 = vmatprep.subr.bf16.mxu0 0
  %1215 = vmatpush1.bf16.msra.mxu0 0
  %1216 = vmatprep.subr.bf16.mxu0 0
  %1217 = vmatpush1.bf16.msra.mxu0 0
  %1218 = vmatprep.mubr.bf16.mxu0 0
  %1219 = vmatmul.mubr.bf16.gmra.mrb[0].mxu0 %v1175
  %v1220 = vpop.f32.mrb[0].mxu0
  %v1221 = vadd.f32 0.0, %v1220
  %v1222 = vpop.f32.mrb[0].mxu0
  %v1223 = vpop.f32.mrb[0].mxu0
  %v1224 = vadd.f32 0.0, %v1223
  %v1225 = vpop.f32.mrb[0].mxu0
  %1226 = vmatprep.mubr.bf16.mxu0 0
  %1227 = vmatmul.mubr.bf16.gmra.mrb[0].mxu0 %v1178
  %v1228 = vpop.f32.mrb[0].mxu0
  %v1229 = vadd.f32 0.0, %v1228
  %v1230 = vpop.f32.mrb[0].mxu0
  %v1231 = vpop.f32.mrb[0].mxu0
  %v1232 = vadd.f32 0.0, %v1231
  %v1233 = vpop.f32.mrb[0].mxu0
  %1234 = vmatprep.mubr.bf16.mxu0 0
  %1235 = vmatmul.mubr.bf16.gmra.mrb[0].mxu0 %v1181
  %v1236 = vpop.f32.mrb[0].mxu0
  %v1237 = vadd.f32 0.0, %v1236
  %v1238 = vpop.f32.mrb[0].mxu0
  %v1239 = vpop.f32.mrb[0].mxu0
  %v1240 = vadd.f32 0.0, %v1239
  %v1241 = vpop.f32.mrb[0].mxu0
  %1242 = vmatprep.mubr.bf16.mxu0 0
  %1243 = vmatmul.mubr.bf16.gmra.mrb[0].mxu0 %v1184
  %v1244 = vpop.f32.mrb[0].mxu0
  %v1245 = vadd.f32 0.0, %v1244
  %v1246 = vpop.f32.mrb[0].mxu0
  %v1247 = vpop.f32.mrb[0].mxu0
  %v1248 = vadd.f32 0.0, %v1247
  %v1249 = vpop.f32.mrb[0].mxu0
  %1250 = vdwg.mxu0
  %v1251 = vmul.f32 %v1221, %v206
  %v1252 = vmul.f32 %v1224, %v206
  %v1253 = vmul.f32 %v1229, %v216
  %v1254 = vmul.f32 %v1232, %v216
  %v1255 = vadd.f32 %v1251, %v1253
  %v1256 = vadd.f32 %v1252, %v1254
  %v1257 = vmul.f32 %v1237, %v226
  %v1258 = vmul.f32 %v1240, %v226
  %v1259 = vadd.f32 %v1255, %v1257
  %v1260 = vadd.f32 %v1256, %v1258
  %v1261 = vmul.f32 %v1245, %v236
  %v1262 = vmul.f32 %v1248, %v236
  %v1263 = vadd.f32 %v1259, %v1261
  %v1264 = vadd.f32 %v1260, %v1262
  %v1265 = vpack.c.bf16 %v1264, %v1263
  %s1266 = scalar_lea.vmem %s9, 16
  %v1267 = vld [vmem:[%s1266] sm:$0xf]
  %v1268 = vld [vmem:[%s1266 + $0x4] sm:$0xf]
  %v1269 = vld [vmem:[%s1266 + $0x8] sm:$0xf]
  %v1270 = vld [vmem:[%s1266 + $0xc] sm:$0xf]
  %s1271 = scalar_lea.vmem %s10, 1
  %v1272 = vld [vmem:[%s1271] sm:$0x1]
  %v1274 = vlaneseq
  %v1275 = vshrl.u32 %v1274, 7
  %v1276 = vsub.s32 0, %v1275
  %v1277 = vrot.slane %v1272, %v1276
  %v1283 = vunpack.c.l.b16 %v1267
  %v1284 = vunpack.c.l.b16 %v1268
  %v1285 = vunpack.c.l.b16 %v1269
  %v1286 = vunpack.c.l.b16 %v1270
  %v1287 = vpack.c.b16 %v1284, %v1283
  %v1288 = vpack.c.b16 %v1286, %v1285
  %v1292 = vsel %vm80, %v1265, 0
  %1294 = vmatprep.subr.bf16.mxu0 0
  %1295 = vmatpush1.bf16.msra.mxu0 %v1287
  %1296 = vmatprep.subr.bf16.mxu0 0
  %1297 = vmatpush1.bf16.msra.mxu0 %v1288
  %1298 = vmatprep.subr.bf16.mxu0 0
  %1299 = vmatpush1.bf16.msra.mxu0 0
  %1300 = vmatprep.subr.bf16.mxu0 0
  %1301 = vmatpush1.bf16.msra.mxu0 0
  %1302 = vmatprep.subr.bf16.mxu0 0
  %1303 = vmatpush1.bf16.msra.mxu0 0
  %1304 = vmatprep.subr.bf16.mxu0 0
  %1305 = vmatpush1.bf16.msra.mxu0 0
  %1306 = vmatprep.subr.bf16.mxu0 0
  %1307 = vmatpush1.bf16.msra.mxu0 0
  %1308 = vmatprep.subr.bf16.mxu0 0
  %1309 = vmatpush1.bf16.msra.mxu0 0
  %1310 = vmatprep.subr.bf16.mxu0 0
  %1311 = vmatpush1.bf16.msra.mxu0 0
  %1312 = vmatprep.subr.bf16.mxu0 0
  %1313 = vmatpush1.bf16.msra.mxu0 0
  %1314 = vmatprep.subr.bf16.mxu0 0
  %1315 = vmatpush1.bf16.msra.mxu0 0
  %1316 = vmatprep.subr.bf16.mxu0 0
  %1317 = vmatpush1.bf16.msra.mxu0 0
  %1318 = vmatprep.subr.bf16.mxu0 0
  %1319 = vmatpush1.bf16.msra.mxu0 0
  %1320 = vmatprep.subr.bf16.mxu0 0
  %1321 = vmatpush1.bf16.msra.mxu0 0
  %1322 = vmatprep.subr.bf16.mxu0 0
  %1323 = vmatpush1.bf16.msra.mxu0 0
  %1324 = vmatprep.subr.bf16.mxu0 0
  %1325 = vmatpush1.bf16.msra.mxu0 0
  %1326 = vmatprep.mubr.bf16.mxu0 0
  %1327 = vmatmul.mubr.bf16.gmra.mrb[0].mxu0 %v1292
  %v1328 = vpop.f32.mrb[0].mxu0
  %v1329 = vadd.f32 %v1277, %v1328
  %v1330 = vpop.f32.mrb[0].mxu0
  %v1331 = vpop.f32.mrb[0].mxu0
  %v1332 = vadd.f32 %v1277, %v1331
  %v1333 = vpop.f32.mrb[0].mxu0
  %1334 = vdwg.mxu0
  %v1335 = vadd.f32 %v1329, %v895
  %v1336 = vadd.f32 %v1332, %v896
  %s1337 = scalar_lea.vmem %s11, 1
  %v1338 = vld [vmem:[%s1337] sm:$0x1]
  %s1339 = scalar_lea.vmem %s12, 1
  %v1340 = vld [vmem:[%s1339] sm:$0x1]
  %v1341 = vsel %vm80, %v1335, 0.0
  %1342 = vadd.xlane.f32.xlu0 %v1341
  %v1343 = vpop.xlane.xlu0 %1342
  %v1344 = vsel %vm80, %v1336, 0.0
  %1345 = vadd.xlane.f32.xlu0 %v1344
  %v1346 = vpop.xlane.xlu0 %1345
  %v1347 = vmul.f32 %v1343, %v87
  %v1348 = vmul.f32 %v1346, %v87
  %v1349 = vsub.f32 %v1335, %v1347
  %v1350 = vsub.f32 %v1336, %v1348
  %v1351 = vmul.f32 %v1349, %v1349
  %v1352 = vmul.f32 %v1350, %v1350
  %v1353 = vsel %vm80, %v1351, 0.0
  %1354 = vadd.xlane.f32.xlu0 %v1353
  %v1355 = vpop.xlane.xlu0 %1354
  %v1356 = vsel %vm80, %v1352, 0.0
  %1357 = vadd.xlane.f32.xlu0 %v1356
  %v1358 = vpop.xlane.xlu0 %1357
  %v1359 = vmul.f32 %v1355, %v87
  %v1360 = vmul.f32 %v1358, %v87
  %v1361 = vadd.f32 %v1359, 1e-12
  %v1362 = vadd.f32 %v1360, 1e-12
  %v1363 = vrsqrt.pop %v1361
  %v1364 = vrsqrt.pop %v1362
  %v1365 = vmul.f32 %v1349, %v1363
  %v1366 = vmul.f32 %v1350, %v1364
  %v1368 = vlaneseq
  %v1369 = vshrl.u32 %v1368, 7
  %v1370 = vsub.s32 0, %v1369
  %v1371 = vrot.slane %v1338, %v1370
  %v1373 = vmul.f32 %v1371, %v1365
  %v1374 = vmul.f32 %v1371, %v1366
  %v1376 = vlaneseq
  %v1377 = vshrl.u32 %v1376, 7
  %v1378 = vsub.s32 0, %v1377
  %v1379 = vrot.slane %v1340, %v1378
  %v1381 = vadd.f32 %v1373, %v1379
  %v1382 = vadd.f32 %v1374, %v1379
  %v1383 = vpack.c.bf16 %v1382, %v1381
  %s1384 = scalar_lea.vmem %s13, 16
  %v1385 = vld [vmem:[%s1384] sm:$0xf]
  %v1386 = vld [vmem:[%s1384 + $0x4] sm:$0xf]
  %v1387 = vld [vmem:[%s1384 + $0x8] sm:$0xf]
  %v1388 = vld [vmem:[%s1384 + $0xc] sm:$0xf]
  %s1389 = scalar_lea.vmem %s14, 1
  %v1390 = vld [vmem:[%s1389] sm:$0x1]
  %v1392 = vlaneseq
  %v1393 = vshrl.u32 %v1392, 7
  %v1394 = vsub.s32 0, %v1393
  %v1395 = vrot.slane %v1390, %v1394
  %v1401 = vunpack.c.l.b16 %v1385
  %v1402 = vunpack.c.l.b16 %v1386
  %v1403 = vunpack.c.l.b16 %v1387
  %v1404 = vunpack.c.l.b16 %v1388
  %v1405 = vpack.c.b16 %v1402, %v1401
  %v1406 = vpack.c.b16 %v1404, %v1403
  %v1410 = vsel %vm80, %v1383, 0
  %1412 = vmatprep.subr.bf16.mxu0 0
  %1413 = vmatpush1.bf16.msra.mxu0 %v1405
  %1414 = vmatprep.subr.bf16.mxu0 0
  %1415 = vmatpush1.bf16.msra.mxu0 %v1406
  %1416 = vmatprep.subr.bf16.mxu0 0
  %1417 = vmatpush1.bf16.msra.mxu0 0
  %1418 = vmatprep.subr.bf16.mxu0 0
  %1419 = vmatpush1.bf16.msra.mxu0 0
  %1420 = vmatprep.subr.bf16.mxu0 0
  %1421 = vmatpush1.bf16.msra.mxu0 0
  %1422 = vmatprep.subr.bf16.mxu0 0
  %1423 = vmatpush1.bf16.msra.mxu0 0
  %1424 = vmatprep.subr.bf16.mxu0 0
  %1425 = vmatpush1.bf16.msra.mxu0 0
  %1426 = vmatprep.subr.bf16.mxu0 0
  %1427 = vmatpush1.bf16.msra.mxu0 0
  %1428 = vmatprep.subr.bf16.mxu0 0
  %1429 = vmatpush1.bf16.msra.mxu0 0
  %1430 = vmatprep.subr.bf16.mxu0 0
  %1431 = vmatpush1.bf16.msra.mxu0 0
  %1432 = vmatprep.subr.bf16.mxu0 0
  %1433 = vmatpush1.bf16.msra.mxu0 0
  %1434 = vmatprep.subr.bf16.mxu0 0
  %1435 = vmatpush1.bf16.msra.mxu0 0
  %1436 = vmatprep.subr.bf16.mxu0 0
  %1437 = vmatpush1.bf16.msra.mxu0 0
  %1438 = vmatprep.subr.bf16.mxu0 0
  %1439 = vmatpush1.bf16.msra.mxu0 0
  %1440 = vmatprep.subr.bf16.mxu0 0
  %1441 = vmatpush1.bf16.msra.mxu0 0
  %1442 = vmatprep.subr.bf16.mxu0 0
  %1443 = vmatpush1.bf16.msra.mxu0 0
  %1444 = vmatprep.mubr.bf16.mxu0 0
  %1445 = vmatmul.mubr.bf16.gmra.mrb[0].mxu0 %v1410
  %v1446 = vpop.f32.mrb[0].mxu0
  %v1447 = vadd.f32 %v1395, %v1446
  %v1448 = vpop.f32.mrb[0].mxu0
  %v1449 = vpop.f32.mrb[0].mxu0
  %v1450 = vadd.f32 %v1395, %v1449
  %v1451 = vpop.f32.mrb[0].mxu0
  %1452 = vdwg.mxu0
  %v1453 = vmul.f32 %v1447, 0.5
  %v1454 = vmul.f32 %v1450, 0.5
  %v1455 = vmul.f32 %v1447, 0.70710677
  %v1456 = vmul.f32 %v1450, 0.70710677
  %v1457 = vand.u32 2147483647, %v1455
  %v1458 = vand.u32 2147483647, %v1456
  %v1459 = vmul.f32 %v1457, 0.3275911
  %v1460 = vmul.f32 %v1458, 0.3275911
  %v1461 = vadd.f32 %v1459, 1.0
  %v1462 = vadd.f32 %v1460, 1.0
  %v1463 = vrcp.pop %v1461
  %v1464 = vmul.f32 1.0, %v1463
  %v1465 = vrcp.pop %v1462
  %v1466 = vmul.f32 1.0, %v1465
  %v1467 = vmul.f32 %v1464, 1.0614054
  %v1468 = vmul.f32 %v1466, 1.0614054
  %v1469 = vadd.f32 %v1467, -1.4531521
  %v1470 = vadd.f32 %v1468, -1.4531521
  %v1471 = vmul.f32 %v1469, %v1464
  %v1472 = vmul.f32 %v1470, %v1466
  %v1473 = vadd.f32 %v1471, 1.4214138
  %v1474 = vadd.f32 %v1472, 1.4214138
  %v1475 = vmul.f32 %v1473, %v1464
  %v1476 = vmul.f32 %v1474, %v1466
  %v1477 = vadd.f32 %v1475, -0.28449672
  %v1478 = vadd.f32 %v1476, -0.28449672
  %v1479 = vmul.f32 %v1477, %v1464
  %v1480 = vmul.f32 %v1478, %v1466
  %v1481 = vadd.f32 %v1479, 0.2548296
  %v1482 = vadd.f32 %v1480, 0.2548296
  %v1483 = vmul.f32 %v1481, %v1464
  %v1484 = vmul.f32 %v1482, %v1466
  %v1485 = vsub.f32 0.0, %v1457
  %v1486 = vsub.f32 0.0, %v1458
  %v1487 = vmul.f32 %v1485, %v1457
  %v1488 = vmul.f32 %v1486, %v1458
  %v1489 = vmul.f32 %v1487, 1.442695
  %v1490 = vpow.pop %v1489
  %v1491 = vmul.f32 %v1488, 1.442695
  %v1492 = vpow.pop %v1491
  %v1493 = vmul.f32 %v1483, %v1490
  %v1494 = vmul.f32 %v1484, %v1492
  %v1495 = vsub.f32 1.0, %v1493
  %v1496 = vsub.f32 1.0, %v1494
  %vm1497 = vcmp.ge.f32.partialorder %v1455, 0.0
  %vm1498 = vcmp.ge.f32.partialorder %v1456, 0.0
  %v1499 = vsub.f32 0.0, %v1495
  %v1500 = vsub.f32 0.0, %v1496
  %v1501 = vsel %vm1497, %v1495, %v1499
  %v1502 = vsel %vm1498, %v1496, %v1500
  %v1503 = vadd.f32 %v1501, 1.0
  %v1504 = vadd.f32 %v1502, 1.0
  %v1505 = vmul.f32 %v1453, %v1503
  %v1506 = vmul.f32 %v1454, %v1504
  %v1507 = vpack.c.bf16 %v1506, %v1505
  %s1508 = scalar_lea.vmem %s15, 32
  %v1509 = vld [vmem:[%s1508] sm:$0xf]
  %v1510 = vld [vmem:[%s1508 + $0x4] sm:$0xf]
  %v1511 = vld [vmem:[%s1508 + $0x8] sm:$0xf]
  %v1512 = vld [vmem:[%s1508 + $0xc] sm:$0xf]
  %v1513 = vld [vmem:[%s1508 + $0x10] sm:$0xf]
  %v1514 = vld [vmem:[%s1508 + $0x14] sm:$0xf]
  %v1515 = vld [vmem:[%s1508 + $0x18] sm:$0xf]
  %v1516 = vld [vmem:[%s1508 + $0x1c] sm:$0xf]
  %s1517 = scalar_lea.vmem %s16, 1
  %v1518 = vld [vmem:[%s1517] sm:$0x1]
  %v1520 = vlaneseq
  %v1521 = vshrl.u32 %v1520, 7
  %v1522 = vsub.s32 0, %v1521
  %v1523 = vrot.slane %v1518, %v1522
  %v1533 = vunpack.c.l.b16 %v1509
  %v1534 = vunpack.c.l.b16 %v1510
  %v1535 = vunpack.c.l.b16 %v1511
  %v1536 = vunpack.c.l.b16 %v1512
  %v1537 = vunpack.c.l.b16 %v1513
  %v1538 = vunpack.c.l.b16 %v1514
  %v1539 = vunpack.c.l.b16 %v1515
  %v1540 = vunpack.c.l.b16 %v1516
  %v1541 = vpack.c.b16 %v1534, %v1533
  %v1542 = vpack.c.b16 %v1536, %v1535
  %v1543 = vpack.c.b16 %v1538, %v1537
  %v1544 = vpack.c.b16 %v1540, %v1539
  %v1550 = vsel %vm806, %v1507, 0
  %1552 = vmatprep.subr.bf16.mxu0 0
  %1553 = vmatpush1.bf16.msra.mxu0 %v1541
  %1554 = vmatprep.subr.bf16.mxu0 0
  %1555 = vmatpush1.bf16.msra.mxu0 %v1542
  %1556 = vmatprep.subr.bf16.mxu0 0
  %1557 = vmatpush1.bf16.msra.mxu0 %v1543
  %1558 = vmatprep.subr.bf16.mxu0 0
  %1559 = vmatpush1.bf16.msra.mxu0 %v1544
  %1560 = vmatprep.subr.bf16.mxu0 0
  %1561 = vmatpush1.bf16.msra.mxu0 0
  %1562 = vmatprep.subr.bf16.mxu0 0
  %1563 = vmatpush1.bf16.msra.mxu0 0
  %1564 = vmatprep.subr.bf16.mxu0 0
  %1565 = vmatpush1.bf16.msra.mxu0 0
  %1566 = vmatprep.subr.bf16.mxu0 0
  %1567 = vmatpush1.bf16.msra.mxu0 0
  %1568 = vmatprep.subr.bf16.mxu0 0
  %1569 = vmatpush1.bf16.msra.mxu0 0
  %1570 = vmatprep.subr.bf16.mxu0 0
  %1571 = vmatpush1.bf16.msra.mxu0 0
  %1572 = vmatprep.subr.bf16.mxu0 0
  %1573 = vmatpush1.bf16.msra.mxu0 0
  %1574 = vmatprep.subr.bf16.mxu0 0
  %1575 = vmatpush1.bf16.msra.mxu0 0
  %1576 = vmatprep.subr.bf16.mxu0 0
  %1577 = vmatpush1.bf16.msra.mxu0 0
  %1578 = vmatprep.subr.bf16.mxu0 0
  %1579 = vmatpush1.bf16.msra.mxu0 0
  %1580 = vmatprep.subr.bf16.mxu0 0
  %1581 = vmatpush1.bf16.msra.mxu0 0
  %1582 = vmatprep.subr.bf16.mxu0 0
  %1583 = vmatpush1.bf16.msra.mxu0 0
  %1584 = vmatprep.mubr.bf16.mxu0 0
  %1585 = vmatmul.mubr.bf16.gmra.mrb[0].mxu0 %v1550
  %v1586 = vpop.f32.mrb[0].mxu0
  %v1587 = vadd.f32 %v1523, %v1586
  %v1588 = vpop.f32.mrb[0].mxu0
  %v1589 = vpop.f32.mrb[0].mxu0
  %v1590 = vadd.f32 %v1523, %v1589
  %v1591 = vpop.f32.mrb[0].mxu0
  %1592 = vdwg.mxu0
  %v1593 = vadd.f32 %v1587, %v1381
  %v1594 = vadd.f32 %v1590, %v1382
  %s1595 = scalar_lea.vmem %s17, 1
  %v1596 = vld [vmem:[%s1595] sm:$0x1]
  %s1597 = scalar_lea.vmem %s18, 1
  %v1598 = vld [vmem:[%s1597] sm:$0x1]
  %v1599 = vsel %vm80, %v1593, 0.0
  %1600 = vadd.xlane.f32.xlu0 %v1599
  %v1601 = vpop.xlane.xlu0 %1600
  %v1602 = vsel %vm80, %v1594, 0.0
  %1603 = vadd.xlane.f32.xlu0 %v1602
  %v1604 = vpop.xlane.xlu0 %1603
  %v1605 = vmul.f32 %v1601, %v87
  %v1606 = vmul.f32 %v1604, %v87
  %v1607 = vsub.f32 %v1593, %v1605
  %v1608 = vsub.f32 %v1594, %v1606
  %v1609 = vmul.f32 %v1607, %v1607
  %v1610 = vmul.f32 %v1608, %v1608
  %v1611 = vsel %vm80, %v1609, 0.0
  %1612 = vadd.xlane.f32.xlu0 %v1611
  %v1613 = vpop.xlane.xlu0 %1612
  %v1614 = vsel %vm80, %v1610, 0.0
  %1615 = vadd.xlane.f32.xlu0 %v1614
  %v1616 = vpop.xlane.xlu0 %1615
  %v1617 = vmul.f32 %v1613, %v87
  %v1618 = vmul.f32 %v1616, %v87
  %v1619 = vadd.f32 %v1617, 1e-12
  %v1620 = vadd.f32 %v1618, 1e-12
  %v1621 = vrsqrt.pop %v1619
  %v1622 = vrsqrt.pop %v1620
  %v1623 = vmul.f32 %v1607, %v1621
  %v1624 = vmul.f32 %v1608, %v1622
  %v1626 = vlaneseq
  %v1627 = vshrl.u32 %v1626, 7
  %v1628 = vsub.s32 0, %v1627
  %v1629 = vrot.slane %v1596, %v1628
  %v1631 = vmul.f32 %v1629, %v1623
  %v1632 = vmul.f32 %v1629, %v1624
  %v1634 = vlaneseq
  %v1635 = vshrl.u32 %v1634, 7
  %v1636 = vsub.s32 0, %v1635
  %v1637 = vrot.slane %v1598, %v1636
  %v1639 = vadd.f32 %v1631, %v1637
  %v1640 = vadd.f32 %v1632, %v1637
  %v1641 = vpack.c.bf16 %v1640, %v1639
  %v1642 = vld [vmem:[%s19] sm:$0xf]
  %v1643 = vld [vmem:[%s19 + $0x4] sm:$0xf]
  %v1644 = vld [vmem:[%s19 + $0x8] sm:$0xf]
  %v1645 = vld [vmem:[%s19 + $0xc] sm:$0xf]
  %v1646 = vld [vmem:[%s20] sm:$0x1]
  %v1648 = vlaneseq
  %v1649 = vshrl.u32 %v1648, 7
  %v1650 = vsub.s32 0, %v1649
  %v1651 = vrot.slane %v1646, %v1650
  %v1657 = vunpack.c.l.b16 %v1642
  %v1658 = vunpack.c.l.b16 %v1643
  %v1659 = vunpack.c.l.b16 %v1644
  %v1660 = vunpack.c.l.b16 %v1645
  %v1661 = vpack.c.b16 %v1658, %v1657
  %v1662 = vpack.c.b16 %v1660, %v1659
  %v1666 = vsel %vm80, %v1641, 0
  %1668 = vmatprep.subr.bf16.mxu0 0
  %1669 = vmatpush1.bf16.msra.mxu0 %v1661
  %1670 = vmatprep.subr.bf16.mxu0 0
  %1671 = vmatpush1.bf16.msra.mxu0 %v1662
  %1672 = vmatprep.subr.bf16.mxu0 0
  %1673 = vmatpush1.bf16.msra.mxu0 0
  %1674 = vmatprep.subr.bf16.mxu0 0
  %1675 = vmatpush1.bf16.msra.mxu0 0
  %1676 = vmatprep.subr.bf16.mxu0 0
  %1677 = vmatpush1.bf16.msra.mxu0 0
  %1678 = vmatprep.subr.bf16.mxu0 0
  %1679 = vmatpush1.bf16.msra.mxu0 0
  %1680 = vmatprep.subr.bf16.mxu0 0
  %1681 = vmatpush1.bf16.msra.mxu0 0
  %1682 = vmatprep.subr.bf16.mxu0 0
  %1683 = vmatpush1.bf16.msra.mxu0 0
  %1684 = vmatprep.subr.bf16.mxu0 0
  %1685 = vmatpush1.bf16.msra.mxu0 0
  %1686 = vmatprep.subr.bf16.mxu0 0
  %1687 = vmatpush1.bf16.msra.mxu0 0
  %1688 = vmatprep.subr.bf16.mxu0 0
  %1689 = vmatpush1.bf16.msra.mxu0 0
  %1690 = vmatprep.subr.bf16.mxu0 0
  %1691 = vmatpush1.bf16.msra.mxu0 0
  %1692 = vmatprep.subr.bf16.mxu0 0
  %1693 = vmatpush1.bf16.msra.mxu0 0
  %1694 = vmatprep.subr.bf16.mxu0 0
  %1695 = vmatpush1.bf16.msra.mxu0 0
  %1696 = vmatprep.subr.bf16.mxu0 0
  %1697 = vmatpush1.bf16.msra.mxu0 0
  %1698 = vmatprep.subr.bf16.mxu0 0
  %1699 = vmatpush1.bf16.msra.mxu0 0
  %1700 = vmatprep.mubr.bf16.mxu0 0
  %1701 = vmatmul.mubr.bf16.gmra.mrb[0].mxu0 %v1666
  %v1702 = vpop.f32.mrb[0].mxu0
  %v1703 = vadd.f32 %v1651, %v1702
  %v1704 = vpop.f32.mrb[0].mxu0
  %v1705 = vpop.f32.mrb[0].mxu0
  %v1706 = vadd.f32 %v1651, %v1705
  %v1707 = vpop.f32.mrb[0].mxu0
  %1708 = vdwg.mxu0
  %vm1709 = vcmask 15360
  %1710 = vst.msk [vmem:[%s21] sm:$0xff] %vm1709, %v1703
  %1711 = vst.msk [vmem:[%s21 + $0x8] sm:$0xff] %vm1709, %v1706
  // Predicated region
  $region86: #{tpu_custom_call.1} parent=0 // pred_check
    _
  $region87: #{tpu_custom_call.1} parent=0 // pred_check_branch
    %1713 = sbr.rel (0) target = $region89
  $region88: #{tpu_custom_call.1} parent=0 // pred_region
    _
  $region89: #{tpu_custom_call.1} parent=0 // pred_fallthru
    _
  // Predicated region
  $region90: #{tpu_custom_call.1} parent=0 // pred_check
    _
  $region91: #{tpu_custom_call.1} parent=0 // pred_check_branch
    %1715 = sbr.rel (0) target = $region93
  $region92: #{tpu_custom_call.1} parent=0 // pred_region
    _
  $region93: #{tpu_custom_call.1} parent=0 // pred_fallthru
    _

</llo_original>
